<compile_context>
chip_gen: v5e
topology: v5e:2x2
jax: 0.10.0
libtpu: 0.0.40
codegen_flags: <defaults>
</compile_context>

<pallas_src>
import jax
import jax.numpy as jnp
import numpy as np
from jax.experimental import pallas as pl
from jax.experimental.pallas import tpu as pltpu


def _channel_attn_pool_kernel(x_ref, w1t_ref, b1_ref, w2_ref, b2_ref,
                              x1_ref, pool_ref):
    # Per batch element: GAP -> fc1 -> ReLU -> fc2 -> sigmoid -> channel gate,
    # then ChannelPool (max & mean over channels).
    # x_ref: (1, C, HW)  w1t: (C, Cr)  b1: (1, Cr)  w2: (C, Cr)  b2: (C, 1)
    # x1_ref: (1, C, HW)  pool_ref: (1, 2, HW) rows = [max, mean]
    x = x_ref[0]                                                   # (C, HW)
    g = jnp.mean(x, axis=1, keepdims=True)                         # (C, 1)  GAP
    # fc1 (C -> Cr) + ReLU as broadcast-multiply + sublane reduce (VPU/XLU, no MXU).
    a1 = jnp.sum(w1t_ref[...] * g, axis=0, keepdims=True) + b1_ref[...]   # (1, Cr)
    a1 = jnp.maximum(a1, 0.0)
    # fc2 (Cr -> C) + sigmoid.
    a2 = jnp.sum(w2_ref[...] * a1, axis=1, keepdims=True) + b2_ref[...]   # (C, 1)
    ca = jax.nn.sigmoid(a2)                                        # (C, 1)
    x1 = ca * x                                                    # (C, HW)
    x1_ref[0] = x1
    mx = jnp.max(x1, axis=0, keepdims=True)                        # (1, HW)
    mn = jnp.mean(x1, axis=0, keepdims=True)                       # (1, HW)
    pool_ref[0] = jnp.concatenate([mx, mn], axis=0)                # (2, HW)


def _spatial_fc_kernel(p_ref, x1_ref, wsp_ref, bn_ref, w3_ref, b3_ref,
                       w4_ref, b4_ref, o_ref):
    # Per batch element: 7x7 spatial conv (single im2col matmul) + BN + sigmoid
    # gate, then fc3 -> ReLU -> fc4 -> sigmoid gate.
    # p_ref: (1, KKC, HW) im2col patches   x1_ref: (1, C, HW)
    # wsp: (1, KKC)   bn: (1, 2) = [scale, shift]
    # w3: (Cr, C)  b3: (Cr, 1)   w4: (C, Cr)  b4: (C, 1)
    patches = p_ref[0]                                             # (KKC, HW)
    x1 = x1_ref[0]                                                 # (C, HW)
    C, HW = x1.shape
    Cr = w3_ref.shape[0]

    # Spatial conv as ONE MXU matmul, lane-dense (1, HW) output.
    sconv = jnp.dot(wsp_ref[...], patches,
                    preferred_element_type=jnp.float32)            # (1, HW)
    scale = bn_ref[:, 0:1]                                         # (1, 1)
    shift = bn_ref[:, 1:2]                                         # (1, 1)
    sa = jax.nn.sigmoid(sconv * scale + shift)                     # (1, HW)
    s = sa * x1                                                    # (C, HW)

    # fc3: per-pixel 1x1 conv C -> Cr as Cr*C broadcast-FMAs (skip tiny-K MXU).
    w3 = w3_ref[...]
    c1 = jnp.zeros((Cr, HW), jnp.float32)
    for c in range(C):
        c1 = c1 + w3[:, c:c + 1] * s[c:c + 1, :]
    c1 = jnp.maximum(c1 + b3_ref[...], 0.0)                        # (Cr, HW)

    # fc4: per-pixel 1x1 conv Cr -> C.
    w4 = w4_ref[...]
    c2 = jnp.zeros((C, HW), jnp.float32)
    for r in range(Cr):
        c2 = c2 + w4[:, r:r + 1] * c1[r:r + 1, :]
    c2 = c2 + b4_ref[...]                                          # (C, HW)

    o_ref[0] = jax.nn.sigmoid(c2) * s


@jax.jit
def ire_forward(x, w1, b1, w2, b2, w_sp, bn_gamma, bn_beta, bn_mean, bn_var,
                w3, b3, w4, b4):
    """IRE.forward (only_ch=0 path), NCHW in / NCHW out, float32.
    BatchNorm2d is applied in inference mode with the given running stats."""
    # TODO(synk): training-mode BatchNorm (batch statistics / running-stat update)
    # and the only_ch==1 early-return branch are not implemented (module default is
    # only_ch=0, eval-mode BN).
    eps = 1e-5
    N, C, H, W = x.shape
    HW = H * W
    Cr = w1.shape[0]
    Ks = w_sp.shape[-1]
    pad = (Ks - 1) // 2
    f32 = jnp.float32

    x_f = x.astype(f32).reshape(N, C, HW)
    w1t = jnp.transpose(w1.reshape(Cr, C)).astype(f32)             # (C, Cr)
    b1r = b1.reshape(1, Cr).astype(f32)
    w2m = w2.reshape(C, Cr).astype(f32)                            # (C, Cr)
    b2c = b2.reshape(C, 1).astype(f32)

    x1, pool = pl.pallas_call(
        _channel_attn_pool_kernel,
        out_shape=(jax.ShapeDtypeStruct((N, C, HW), f32),
                   jax.ShapeDtypeStruct((N, 2, HW), f32)),
        grid_spec=pltpu.PrefetchScalarGridSpec(
            num_scalar_prefetch=0,
            grid=(N,),
            in_specs=[
                pl.BlockSpec((1, C, HW), lambda n: (n, 0, 0)),
                pl.BlockSpec((C, Cr), lambda n: (0, 0)),
                pl.BlockSpec((1, Cr), lambda n: (0, 0)),
                pl.BlockSpec((C, Cr), lambda n: (0, 0)),
                pl.BlockSpec((C, 1), lambda n: (0, 0)),
            ],
            out_specs=[
                pl.BlockSpec((1, C, HW), lambda n: (n, 0, 0)),
                pl.BlockSpec((1, 2, HW), lambda n: (n, 0, 0)),
            ],
        ),
        compiler_params=pltpu.CompilerParams(
            dimension_semantics=("parallel",)),
    )(x_f, w1t, b1r, w2m, b2c)

    # im2col for the 7x7, 2-channel spatial conv: pure layout plumbing wrapper-side;
    # the contraction itself runs in the kernel as one matmul (K = 2*7*7 = 98).
    KKC = 2 * Ks * Ks
    pool4 = pool.reshape(N, 2, H, W)
    pool_pad = jnp.pad(pool4, ((0, 0), (0, 0), (pad, pad), (pad, pad)))
    cols = []
    for c in range(2):
        for kh in range(Ks):
            for kw in range(Ks):
                cols.append(pool_pad[:, c, kh:kh + H, kw:kw + W].reshape(N, HW))
    patchesT = jnp.stack(cols, axis=1)                             # (N, KKC, HW)
    wsp_flat = w_sp.reshape(1, KKC).astype(f32)                    # same (c,kh,kw) order

    # Fold BatchNorm2d (inference) into a scale & shift pair.
    inv_std = 1.0 / jnp.sqrt(bn_var.astype(f32) + eps)
    bn_scale = bn_gamma.astype(f32) * inv_std
    bn_shift = bn_beta.astype(f32) - bn_mean.astype(f32) * bn_scale
    bn2 = jnp.stack([bn_scale, bn_shift], axis=-1)                 # (1, 2)

    w3m = w3.reshape(Cr, C).astype(f32)
    b3c = b3.reshape(Cr, 1).astype(f32)
    w4m = w4.reshape(C, Cr).astype(f32)
    b4c = b4.reshape(C, 1).astype(f32)

    out = pl.pallas_call(
        _spatial_fc_kernel,
        out_shape=jax.ShapeDtypeStruct((N, C, HW), f32),
        grid_spec=pltpu.PrefetchScalarGridSpec(
            num_scalar_prefetch=0,
            grid=(N,),
            in_specs=[
                pl.BlockSpec((1, KKC, HW), lambda n: (n, 0, 0)),
                pl.BlockSpec((1, C, HW), lambda n: (n, 0, 0)),
                pl.BlockSpec((1, KKC), lambda n: (0, 0)),
                pl.BlockSpec((1, 2), lambda n: (0, 0)),
                pl.BlockSpec((Cr, C), lambda n: (0, 0)),
                pl.BlockSpec((Cr, 1), lambda n: (0, 0)),
                pl.BlockSpec((C, Cr), lambda n: (0, 0)),
                pl.BlockSpec((C, 1), lambda n: (0, 0)),
            ],
            out_specs=pl.BlockSpec((1, C, HW), lambda n: (n, 0, 0)),
        ),
        compiler_params=pltpu.CompilerParams(
            dimension_semantics=("parallel",)),
    )(patchesT, x1, wsp_flat, bn2, w3m, b3c, w4m, b4c)

    return out.reshape(N, C, H, W)


def _reference(x, w1, b1, w2, b2, w_sp, bn_gamma, bn_beta, bn_mean, bn_var,
               w3, b3, w4, b4, eps=1e-5):
    hp = jax.lax.Precision.HIGHEST

    def conv(v, w, b=None, padding="VALID"):
        y = jax.lax.conv_general_dilated(
            v.astype(jnp.float32), w.astype(jnp.float32), (1, 1), padding,
            dimension_numbers=("NCHW", "OIHW", "NCHW"), precision=hp)
        if b is not None:
            y = y + b[None, :, None, None]
        return y

    x_in = x
    g = x.mean(axis=(2, 3), keepdims=True)
    a = jax.nn.relu(conv(g, w1, b1))
    a = conv(a, w2, b2)
    x1 = jax.nn.sigmoid(a) * x_in
    p = jnp.concatenate([x1.max(axis=1, keepdims=True),
                         x1.mean(axis=1, keepdims=True)], axis=1)
    pad = (w_sp.shape[-1] - 1) // 2
    s = conv(p, w_sp, padding=((pad, pad), (pad, pad)))
    s = (s - bn_mean[None, :, None, None]) / jnp.sqrt(bn_var[None, :, None, None] + eps) \
        * bn_gamma[None, :, None, None] + bn_beta[None, :, None, None]
    s = jax.nn.sigmoid(s) * x1
    c = jax.nn.relu(conv(s, w3, b3))
    c = conv(c, w4, b4)
    return jax.nn.sigmoid(c) * s


if __name__ == "__main__":
    # IRE(in_ch=4, rate=2): batch=2, channels=4, spatial=16x16.
    N, C, H, W = 2, 4, 16, 16
    rate = 2
    Cr = C // rate
    Ks = 7

    key = jax.random.PRNGKey(0)
    keys = jax.random.split(key, 10)
    x = jax.random.normal(keys[0], (N, C, H, W), jnp.float32)

    def u(k, shape, fan_in):
        bound = 1.0 / np.sqrt(fan_in)
        return jax.random.uniform(k, shape, jnp.float32, -bound, bound)

    # Parameter shapes match the PyTorch submodules.
    w1 = u(keys[1], (Cr, C, 1, 1), C)
    b1 = u(keys[2], (Cr,), C)
    w2 = u(keys[3], (C, Cr, 1, 1), Cr)
    b2 = u(keys[4], (C,), Cr)
    w_sp = u(keys[5], (1, 2, Ks, Ks), 2 * Ks * Ks)      # spatial conv, bias=False
    bn_gamma = jnp.full((1,), 1.2, jnp.float32)         # BN(1) inference params
    bn_beta = jnp.full((1,), -0.1, jnp.float32)
    bn_mean = jnp.full((1,), 0.05, jnp.float32)
    bn_var = jnp.full((1,), 0.8, jnp.float32)
    w3 = u(keys[6], (Cr, C, 1, 1), C)
    b3 = u(keys[7], (Cr,), C)
    w4 = u(keys[8], (C, Cr, 1, 1), Cr)
    b4 = u(keys[9], (C,), Cr)

    out = ire_forward(x, w1, b1, w2, b2, w_sp, bn_gamma, bn_beta, bn_mean, bn_var,
                      w3, b3, w4, b4)
    out = jax.block_until_ready(out)

    ref = _reference(x, w1, b1, w2, b2, w_sp, bn_gamma, bn_beta, bn_mean, bn_var,
                     w3, b3, w4, b4)
    assert out.shape == (N, C, H, W)
    np.testing.assert_allclose(np.asarray(out), np.asarray(ref),
                               rtol=2e-3, atol=2e-3)
    print("KERNEL_OK")
</pallas_src>

<mosaic_0001>
module attributes {stable_mosaic.version = 11 : i64} {
  func.func @_channel_attn_pool_kernel(%arg0: i32, %arg1: memref<1x4x256xf32, #tpu.memory_space<vmem>>, %arg2: memref<4x2xf32, #tpu.memory_space<vmem>>, %arg3: memref<1x2xf32, #tpu.memory_space<vmem>>, %arg4: memref<4x2xf32, #tpu.memory_space<vmem>>, %arg5: memref<4x1xf32, #tpu.memory_space<vmem>>, %arg6: memref<1x4x256xf32, #tpu.memory_space<vmem>>, %arg7: memref<1x2x256xf32, #tpu.memory_space<vmem>>) attributes {dimension_semantics = [#tpu.dimension_semantics<parallel>], iteration_bounds = array<i64: 2>, scalar_prefetch = 0 : i64, scratch_operands = 0 : i64, tpu.core_type = #tpu.core_type<tc>, window_params = [{transform_indices = @transform_0, window_bounds = array<i64: 1, 4, 256>}, {pipeline_mode = #tpu.pipeline_mode<synchronous>, transform_indices = @transform_1, window_bounds = array<i64: 4, 2>}, {pipeline_mode = #tpu.pipeline_mode<synchronous>, transform_indices = @transform_2, window_bounds = array<i64: 1, 2>}, {pipeline_mode = #tpu.pipeline_mode<synchronous>, transform_indices = @transform_3, window_bounds = array<i64: 4, 2>}, {pipeline_mode = #tpu.pipeline_mode<synchronous>, transform_indices = @transform_4, window_bounds = array<i64: 4, 1>}, {transform_indices = @transform_5, window_bounds = array<i64: 1, 4, 256>}, {transform_indices = @transform_6, window_bounds = array<i64: 1, 2, 256>}]} {
    %c0 = arith.constant 0 : index
    %c0_0 = arith.constant 0 : index
    %c0_1 = arith.constant 0 : index
    %0 = vector.load %arg1[%c0, %c0_0, %c0_1] : memref<1x4x256xf32, #tpu.memory_space<vmem>>, vector<1x4x256xf32>
    %1 = vector.shape_cast %0 : vector<1x4x256xf32> to vector<4x256xf32>
    %cst = arith.constant dense<0.000000e+00> : vector<4xf32>
    %2 = vector.multi_reduction <add>, %1, %cst [1] : vector<4x256xf32> to vector<4xf32>
    %3 = vector.shape_cast %2 : vector<4xf32> to vector<4x1xf32>
    %cst_2 = arith.constant 2.560000e+02 : f32
    %4 = vector.broadcast %cst_2 : f32 to vector<4x1xf32>
    %5 = arith.divf %3, %4 : vector<4x1xf32>
    %c0_3 = arith.constant 0 : index
    %c0_4 = arith.constant 0 : index
    %6 = vector.load %arg2[%c0_3, %c0_4] : memref<4x2xf32, #tpu.memory_space<vmem>>, vector<4x2xf32>
    %7 = vector.broadcast %5 : vector<4x1xf32> to vector<4x2xf32>
    %8 = arith.mulf %6, %7 : vector<4x2xf32>
    %cst_5 = arith.constant dense<0.000000e+00> : vector<2xf32>
    %9 = vector.multi_reduction <add>, %8, %cst_5 [0] : vector<4x2xf32> to vector<2xf32>
    %10 = vector.shape_cast %9 : vector<2xf32> to vector<1x2xf32>
    %c0_6 = arith.constant 0 : index
    %c0_7 = arith.constant 0 : index
    %11 = vector.load %arg3[%c0_6, %c0_7] : memref<1x2xf32, #tpu.memory_space<vmem>>, vector<1x2xf32>
    %12 = arith.addf %10, %11 : vector<1x2xf32>
    %cst_8 = arith.constant 0.000000e+00 : f32
    %13 = vector.broadcast %cst_8 : f32 to vector<1x2xf32>
    %14 = arith.maximumf %12, %13 : vector<1x2xf32>
    %c0_9 = arith.constant 0 : index
    %c0_10 = arith.constant 0 : index
    %15 = vector.load %arg4[%c0_9, %c0_10] : memref<4x2xf32, #tpu.memory_space<vmem>>, vector<4x2xf32>
    %16 = vector.broadcast %14 : vector<1x2xf32> to vector<4x2xf32>
    %17 = arith.mulf %15, %16 : vector<4x2xf32>
    %cst_11 = arith.constant dense<0.000000e+00> : vector<4xf32>
    %18 = vector.multi_reduction <add>, %17, %cst_11 [1] : vector<4x2xf32> to vector<4xf32>
    %19 = vector.shape_cast %18 : vector<4xf32> to vector<4x1xf32>
    %c0_12 = arith.constant 0 : index
    %c0_13 = arith.constant 0 : index
    %20 = vector.load %arg5[%c0_12, %c0_13] : memref<4x1xf32, #tpu.memory_space<vmem>>, vector<4x1xf32>
    %21 = arith.addf %19, %20 : vector<4x1xf32>
    %22 = arith.negf %21 : vector<4x1xf32>
    %23 = math.exp %22 : vector<4x1xf32>
    %cst_14 = arith.constant 1.000000e+00 : f32
    %24 = vector.broadcast %cst_14 : f32 to vector<4x1xf32>
    %25 = arith.addf %24, %23 : vector<4x1xf32>
    %26 = arith.divf %24, %25 : vector<4x1xf32>
    %27 = vector.broadcast %26 : vector<4x1xf32> to vector<4x256xf32>
    %28 = arith.mulf %27, %1 : vector<4x256xf32>
    %c0_15 = arith.constant 0 : index
    %c0_16 = arith.constant 0 : index
    %c0_17 = arith.constant 0 : index
    %29 = vector.load %arg6[%c0_15, %c0_16, %c0_17] : memref<1x4x256xf32, #tpu.memory_space<vmem>>, vector<1x4x256xf32>
    %30 = vector.shape_cast %29 : vector<1x4x256xf32> to vector<4x256xf32>
    %31 = vector.shape_cast %28 : vector<4x256xf32> to vector<1x4x256xf32>
    tpu.vector_store %arg6[%c0_15, %c0_16, %c0_17], %31 {strides = array<i32>} : memref<1x4x256xf32, #tpu.memory_space<vmem>>, vector<1x4x256xf32>,
    %cst_18 = arith.constant dense<0xFF800000> : vector<256xf32>
    %32 = vector.multi_reduction <maximumf>, %28, %cst_18 [0] : vector<4x256xf32> to vector<256xf32>
    %33 = vector.shape_cast %32 : vector<256xf32> to vector<1x256xf32>
    %cst_19 = arith.constant dense<0.000000e+00> : vector<256xf32>
    %34 = vector.multi_reduction <add>, %28, %cst_19 [0] : vector<4x256xf32> to vector<256xf32>
    %35 = vector.shape_cast %34 : vector<256xf32> to vector<1x256xf32>
    %cst_20 = arith.constant 4.000000e+00 : f32
    %36 = vector.broadcast %cst_20 : f32 to vector<1x256xf32>
    %37 = arith.divf %35, %36 : vector<1x256xf32>
    %38 = tpu.concatenate %33, %37 in 0 : vector<1x256xf32>, vector<1x256xf32> -> vector<2x256xf32>
    %c0_21 = arith.constant 0 : index
    %c0_22 = arith.constant 0 : index
    %c0_23 = arith.constant 0 : index
    %39 = vector.load %arg7[%c0_21, %c0_22, %c0_23] : memref<1x2x256xf32, #tpu.memory_space<vmem>>, vector<1x2x256xf32>
    %40 = vector.shape_cast %39 : vector<1x2x256xf32> to vector<2x256xf32>
    %41 = vector.shape_cast %38 : vector<2x256xf32> to vector<1x2x256xf32>
    tpu.vector_store %arg7[%c0_21, %c0_22, %c0_23], %41 {strides = array<i32>} : memref<1x2x256xf32, #tpu.memory_space<vmem>>, vector<1x2x256xf32>,
    return
  }
  func.func @transform_0(%arg0: i32) -> (i32, i32, i32) {
    %c0_i32 = arith.constant 0 : i32
    %c0_i32_0 = arith.constant 0 : i32
    %c0_i32_1 = arith.constant 0 : i32
    return %arg0, %c0_i32, %c0_i32_0 : i32, i32, i32
  }
  func.func @transform_1(%arg0: i32) -> (i32, i32) {
    %c0_i32 = arith.constant 0 : i32
    %c0_i32_0 = arith.constant 0 : i32
    %c0_i32_1 = arith.constant 0 : i32
    return %c0_i32, %c0_i32_0 : i32, i32
  }
  func.func @transform_2(%arg0: i32) -> (i32, i32) {
    %c0_i32 = arith.constant 0 : i32
    %c0_i32_0 = arith.constant 0 : i32
    %c0_i32_1 = arith.constant 0 : i32
    return %c0_i32, %c0_i32_0 : i32, i32
  }
  func.func @transform_3(%arg0: i32) -> (i32, i32) {
    %c0_i32 = arith.constant 0 : i32
    %c0_i32_0 = arith.constant 0 : i32
    %c0_i32_1 = arith.constant 0 : i32
    return %c0_i32, %c0_i32_0 : i32, i32
  }
  func.func @transform_4(%arg0: i32) -> (i32, i32) {
    %c0_i32 = arith.constant 0 : i32
    %c0_i32_0 = arith.constant 0 : i32
    %c0_i32_1 = arith.constant 0 : i32
    return %c0_i32, %c0_i32_0 : i32, i32
  }
  func.func @transform_5(%arg0: i32) -> (i32, i32, i32) {
    %c0_i32 = arith.constant 0 : i32
    %c0_i32_0 = arith.constant 0 : i32
    %c0_i32_1 = arith.constant 0 : i32
    return %arg0, %c0_i32, %c0_i32_0 : i32, i32, i32
  }
  func.func @transform_6(%arg0: i32) -> (i32, i32, i32) {
    %c0_i32 = arith.constant 0 : i32
    %c0_i32_0 = arith.constant 0 : i32
    %c0_i32_1 = arith.constant 0 : i32
    return %arg0, %c0_i32, %c0_i32_0 : i32, i32, i32
  }
}

module attributes {stable_mosaic.version = 11 : i64} {
  func.func @_spatial_fc_kernel(%arg0: i32, %arg1: memref<1x98x256xf32, #tpu.memory_space<vmem>>, %arg2: memref<1x4x256xf32, #tpu.memory_space<vmem>>, %arg3: memref<1x98xf32, #tpu.memory_space<vmem>>, %arg4: memref<1x2xf32, #tpu.memory_space<vmem>>, %arg5: memref<2x4xf32, #tpu.memory_space<vmem>>, %arg6: memref<2x1xf32, #tpu.memory_space<vmem>>, %arg7: memref<4x2xf32, #tpu.memory_space<vmem>>, %arg8: memref<4x1xf32, #tpu.memory_space<vmem>>, %arg9: memref<1x4x256xf32, #tpu.memory_space<vmem>>) attributes {dimension_semantics = [#tpu.dimension_semantics<parallel>], iteration_bounds = array<i64: 2>, scalar_prefetch = 0 : i64, scratch_operands = 0 : i64, tpu.core_type = #tpu.core_type<tc>, window_params = [{transform_indices = @transform_0, window_bounds = array<i64: 1, 98, 256>}, {transform_indices = @transform_1, window_bounds = array<i64: 1, 4, 256>}, {pipeline_mode = #tpu.pipeline_mode<synchronous>, transform_indices = @transform_2, window_bounds = array<i64: 1, 98>}, {pipeline_mode = #tpu.pipeline_mode<synchronous>, transform_indices = @transform_3, window_bounds = array<i64: 1, 2>}, {pipeline_mode = #tpu.pipeline_mode<synchronous>, transform_indices = @transform_4, window_bounds = array<i64: 2, 4>}, {pipeline_mode = #tpu.pipeline_mode<synchronous>, transform_indices = @transform_5, window_bounds = array<i64: 2, 1>}, {pipeline_mode = #tpu.pipeline_mode<synchronous>, transform_indices = @transform_6, window_bounds = array<i64: 4, 2>}, {pipeline_mode = #tpu.pipeline_mode<synchronous>, transform_indices = @transform_7, window_bounds = array<i64: 4, 1>}, {transform_indices = @transform_8, window_bounds = array<i64: 1, 4, 256>}]} {
    %c0 = arith.constant 0 : index
    %c0_0 = arith.constant 0 : index
    %c0_1 = arith.constant 0 : index
    %0 = vector.load %arg1[%c0, %c0_0, %c0_1] : memref<1x98x256xf32, #tpu.memory_space<vmem>>, vector<1x98x256xf32>
    %1 = vector.shape_cast %0 : vector<1x98x256xf32> to vector<98x256xf32>
    %c0_2 = arith.constant 0 : index
    %c0_3 = arith.constant 0 : index
    %c0_4 = arith.constant 0 : index
    %2 = vector.load %arg2[%c0_2, %c0_3, %c0_4] : memref<1x4x256xf32, #tpu.memory_space<vmem>>, vector<1x4x256xf32>
    %3 = vector.shape_cast %2 : vector<1x4x256xf32> to vector<4x256xf32>
    %c0_5 = arith.constant 0 : index
    %c0_6 = arith.constant 0 : index
    %4 = vector.load %arg3[%c0_5, %c0_6] : memref<1x98xf32, #tpu.memory_space<vmem>>, vector<1x98xf32>
    %cst = arith.constant dense<0.000000e+00> : vector<1x256xf32>
    %5 = tpu.matmul %4, %1, %cst {dimension_numbers = #tpu.dot_dimension_numbers<[1], [0], [0], [1], [0, 0, 1, 1], [], []>} : vector<1x98xf32>, vector<98x256xf32>, vector<1x256xf32> -> vector<1x256xf32>
    %c0_7 = arith.constant 0 : index
    %c0_8 = arith.constant 0 : index
    %6 = vector.load %arg4[%c0_7, %c0_8] : memref<1x2xf32, #tpu.memory_space<vmem>>, vector<1x1xf32>
    %c0_9 = arith.constant 0 : index
    %c1 = arith.constant 1 : index
    %7 = vector.load %arg4[%c0_9, %c1] : memref<1x2xf32, #tpu.memory_space<vmem>>, vector<1x1xf32>
    %8 = vector.broadcast %6 : vector<1x1xf32> to vector<1x256xf32>
    %9 = arith.mulf %5, %8 : vector<1x256xf32>
    %10 = vector.broadcast %7 : vector<1x1xf32> to vector<1x256xf32>
    %11 = arith.addf %9, %10 : vector<1x256xf32>
    %12 = arith.negf %11 : vector<1x256xf32>
    %13 = math.exp %12 : vector<1x256xf32>
    %cst_10 = arith.constant 1.000000e+00 : f32
    %14 = vector.broadcast %cst_10 : f32 to vector<1x256xf32>
    %15 = arith.addf %14, %13 : vector<1x256xf32>
    %16 = arith.divf %14, %15 : vector<1x256xf32>
    %17 = vector.broadcast %16 : vector<1x256xf32> to vector<4x256xf32>
    %18 = arith.mulf %17, %3 : vector<4x256xf32>
    %c0_11 = arith.constant 0 : index
    %c0_12 = arith.constant 0 : index
    %19 = vector.load %arg5[%c0_11, %c0_12] : memref<2x4xf32, #tpu.memory_space<vmem>>, vector<2x4xf32>
    %cst_13 = arith.constant 0.000000e+00 : f32
    %20 = vector.broadcast %cst_13 : f32 to vector<2x256xf32>
    %21 = vector.extract_strided_slice %19 {offsets = [0, 0], sizes = [2, 1], strides = [1, 1]} : vector<2x4xf32> to vector<2x1xf32>
    %22 = vector.extract_strided_slice %18 {offsets = [0, 0], sizes = [1, 256], strides = [1, 1]} : vector<4x256xf32> to vector<1x256xf32>
    %23 = vector.broadcast %21 : vector<2x1xf32> to vector<2x256xf32>
    %24 = vector.broadcast %22 : vector<1x256xf32> to vector<2x256xf32>
    %25 = arith.mulf %23, %24 : vector<2x256xf32>
    %26 = arith.addf %20, %25 : vector<2x256xf32>
    %27 = vector.extract_strided_slice %19 {offsets = [0, 1], sizes = [2, 1], strides = [1, 1]} : vector<2x4xf32> to vector<2x1xf32>
    %28 = vector.extract_strided_slice %18 {offsets = [1, 0], sizes = [1, 256], strides = [1, 1]} : vector<4x256xf32> to vector<1x256xf32>
    %29 = vector.broadcast %27 : vector<2x1xf32> to vector<2x256xf32>
    %30 = vector.broadcast %28 : vector<1x256xf32> to vector<2x256xf32>
    %31 = arith.mulf %29, %30 : vector<2x256xf32>
    %32 = arith.addf %26, %31 : vector<2x256xf32>
    %33 = vector.extract_strided_slice %19 {offsets = [0, 2], sizes = [2, 1], strides = [1, 1]} : vector<2x4xf32> to vector<2x1xf32>
    %34 = vector.extract_strided_slice %18 {offsets = [2, 0], sizes = [1, 256], strides = [1, 1]} : vector<4x256xf32> to vector<1x256xf32>
    %35 = vector.broadcast %33 : vector<2x1xf32> to vector<2x256xf32>
    %36 = vector.broadcast %34 : vector<1x256xf32> to vector<2x256xf32>
    %37 = arith.mulf %35, %36 : vector<2x256xf32>
    %38 = arith.addf %32, %37 : vector<2x256xf32>
    %39 = vector.extract_strided_slice %19 {offsets = [0, 3], sizes = [2, 1], strides = [1, 1]} : vector<2x4xf32> to vector<2x1xf32>
    %40 = vector.extract_strided_slice %18 {offsets = [3, 0], sizes = [1, 256], strides = [1, 1]} : vector<4x256xf32> to vector<1x256xf32>
    %41 = vector.broadcast %39 : vector<2x1xf32> to vector<2x256xf32>
    %42 = vector.broadcast %40 : vector<1x256xf32> to vector<2x256xf32>
    %43 = arith.mulf %41, %42 : vector<2x256xf32>
    %44 = arith.addf %38, %43 : vector<2x256xf32>
    %c0_14 = arith.constant 0 : index
    %c0_15 = arith.constant 0 : index
    %45 = vector.load %arg6[%c0_14, %c0_15] : memref<2x1xf32, #tpu.memory_space<vmem>>, vector<2x1xf32>
    %46 = vector.broadcast %45 : vector<2x1xf32> to vector<2x256xf32>
    %47 = arith.addf %44, %46 : vector<2x256xf32>
    %cst_16 = arith.constant 0.000000e+00 : f32
    %48 = vector.broadcast %cst_16 : f32 to vector<2x256xf32>
    %49 = arith.maximumf %47, %48 : vector<2x256xf32>
    %c0_17 = arith.constant 0 : index
    %c0_18 = arith.constant 0 : index
    %50 = vector.load %arg7[%c0_17, %c0_18] : memref<4x2xf32, #tpu.memory_space<vmem>>, vector<4x2xf32>
    %cst_19 = arith.constant 0.000000e+00 : f32
    %51 = vector.broadcast %cst_19 : f32 to vector<4x256xf32>
    %52 = vector.extract_strided_slice %50 {offsets = [0, 0], sizes = [4, 1], strides = [1, 1]} : vector<4x2xf32> to vector<4x1xf32>
    %53 = vector.extract_strided_slice %49 {offsets = [0, 0], sizes = [1, 256], strides = [1, 1]} : vector<2x256xf32> to vector<1x256xf32>
    %54 = vector.broadcast %52 : vector<4x1xf32> to vector<4x256xf32>
    %55 = vector.broadcast %53 : vector<1x256xf32> to vector<4x256xf32>
    %56 = arith.mulf %54, %55 : vector<4x256xf32>
    %57 = arith.addf %51, %56 : vector<4x256xf32>
    %58 = vector.extract_strided_slice %50 {offsets = [0, 1], sizes = [4, 1], strides = [1, 1]} : vector<4x2xf32> to vector<4x1xf32>
    %59 = vector.extract_strided_slice %49 {offsets = [1, 0], sizes = [1, 256], strides = [1, 1]} : vector<2x256xf32> to vector<1x256xf32>
    %60 = vector.broadcast %58 : vector<4x1xf32> to vector<4x256xf32>
    %61 = vector.broadcast %59 : vector<1x256xf32> to vector<4x256xf32>
    %62 = arith.mulf %60, %61 : vector<4x256xf32>
    %63 = arith.addf %57, %62 : vector<4x256xf32>
    %c0_20 = arith.constant 0 : index
    %c0_21 = arith.constant 0 : index
    %64 = vector.load %arg8[%c0_20, %c0_21] : memref<4x1xf32, #tpu.memory_space<vmem>>, vector<4x1xf32>
    %65 = vector.broadcast %64 : vector<4x1xf32> to vector<4x256xf32>
    %66 = arith.addf %63, %65 : vector<4x256xf32>
    %67 = arith.negf %66 : vector<4x256xf32>
    %68 = math.exp %67 : vector<4x256xf32>
    %cst_22 = arith.constant 1.000000e+00 : f32
    %69 = vector.broadcast %cst_22 : f32 to vector<4x256xf32>
    %70 = arith.addf %69, %68 : vector<4x256xf32>
    %71 = arith.divf %69, %70 : vector<4x256xf32>
    %72 = arith.mulf %71, %18 : vector<4x256xf32>
    %c0_23 = arith.constant 0 : index
    %c0_24 = arith.constant 0 : index
    %c0_25 = arith.constant 0 : index
    %73 = vector.load %arg9[%c0_23, %c0_24, %c0_25] : memref<1x4x256xf32, #tpu.memory_space<vmem>>, vector<1x4x256xf32>
    %74 = vector.shape_cast %73 : vector<1x4x256xf32> to vector<4x256xf32>
    %75 = vector.shape_cast %72 : vector<4x256xf32> to vector<1x4x256xf32>
    tpu.vector_store %arg9[%c0_23, %c0_24, %c0_25], %75 {strides = array<i32>} : memref<1x4x256xf32, #tpu.memory_space<vmem>>, vector<1x4x256xf32>,
    return
  }
  func.func @transform_0(%arg0: i32) -> (i32, i32, i32) {
    %c0_i32 = arith.constant 0 : i32
    %c0_i32_0 = arith.constant 0 : i32
    %c0_i32_1 = arith.constant 0 : i32
    return %arg0, %c0_i32, %c0_i32_0 : i32, i32, i32
  }
  func.func @transform_1(%arg0: i32) -> (i32, i32, i32) {
    %c0_i32 = arith.constant 0 : i32
    %c0_i32_0 = arith.constant 0 : i32
    %c0_i32_1 = arith.constant 0 : i32
    return %arg0, %c0_i32, %c0_i32_0 : i32, i32, i32
  }
  func.func @transform_2(%arg0: i32) -> (i32, i32) {
    %c0_i32 = arith.constant 0 : i32
    %c0_i32_0 = arith.constant 0 : i32
    %c0_i32_1 = arith.constant 0 : i32
    return %c0_i32, %c0_i32_0 : i32, i32
  }
  func.func @transform_3(%arg0: i32) -> (i32, i32) {
    %c0_i32 = arith.constant 0 : i32
    %c0_i32_0 = arith.constant 0 : i32
    %c0_i32_1 = arith.constant 0 : i32
    return %c0_i32, %c0_i32_0 : i32, i32
  }
  func.func @transform_4(%arg0: i32) -> (i32, i32) {
    %c0_i32 = arith.constant 0 : i32
    %c0_i32_0 = arith.constant 0 : i32
    %c0_i32_1 = arith.constant 0 : i32
    return %c0_i32, %c0_i32_0 : i32, i32
  }
  func.func @transform_5(%arg0: i32) -> (i32, i32) {
    %c0_i32 = arith.constant 0 : i32
    %c0_i32_0 = arith.constant 0 : i32
    %c0_i32_1 = arith.constant 0 : i32
    return %c0_i32, %c0_i32_0 : i32, i32
  }
  func.func @transform_6(%arg0: i32) -> (i32, i32) {
    %c0_i32 = arith.constant 0 : i32
    %c0_i32_0 = arith.constant 0 : i32
    %c0_i32_1 = arith.constant 0 : i32
    return %c0_i32, %c0_i32_0 : i32, i32
  }
  func.func @transform_7(%arg0: i32) -> (i32, i32) {
    %c0_i32 = arith.constant 0 : i32
    %c0_i32_0 = arith.constant 0 : i32
    %c0_i32_1 = arith.constant 0 : i32
    return %c0_i32, %c0_i32_0 : i32, i32
  }
  func.func @transform_8(%arg0: i32) -> (i32, i32, i32) {
    %c0_i32 = arith.constant 0 : i32
    %c0_i32_0 = arith.constant 0 : i32
    %c0_i32_1 = arith.constant 0 : i32
    return %arg0, %c0_i32, %c0_i32_0 : i32, i32, i32
  }
}

</mosaic_0001>

<llo_original>
// kernel: squeeze.171
$region0: #{squeeze.171}
  %s0 = inlined_call_operand.vmem [shape: f32[2,1,16,16], index: 0, kind: input, shape index: {}]
  %s1 = inlined_call_operand.vmem [shape: f32[2,1,256], index: 1, kind: output, shape index: {}]
  $region1: #{squeeze.171} parent=0
    #allocation0 [shape = 'u8[16384]{0}', space=vmem, size = 0x4000, scoped, tag = 'scoped mem for output reshape']
    %v2 = vld [vmem:[%s0] ss:$8 sm:$0xf]
    %vm3 = vcmask 130048
    %4 = vst.msk [vmem:[#allocation0] ss:$8 sm:$0xf] %vm3, %v2
    %s5 = scalar_lea.vmem %s0, 7
    %v6 = vld [vmem:[%s5] ss:$8 sm:$0xf]
    %7 = vrot.lane.b32.xlu0 %v6, 112
    %v8 = vpop.permute.xlu0 %7
    %vm9 = vcmask 1048448
    %10 = vst.msk [vmem:[#allocation0] ss:$8 sm:$0xf] %vm9, %v8
    %s11 = scalar_lea.vmem %s0, 6
    %v12 = vld [vmem:[%s11] ss:$8 sm:$0xf]
    %13 = vrot.lane.b32.xlu0 %v12, 96
    %v14 = vpop.permute.xlu0 %13
    %vm15 = vcmask 917248
    %16 = vst.msk [vmem:[#allocation0] ss:$8 sm:$0xf] %vm15, %v14
    %s17 = scalar_lea.vmem %s0, 5
    %v18 = vld [vmem:[%s17] ss:$8 sm:$0xf]
    %19 = vrot.lane.b32.xlu0 %v18, 80
    %v20 = vpop.permute.xlu0 %19
    %vm21 = vcmask 786048
    %22 = vst.msk [vmem:[#allocation0] ss:$8 sm:$0xf] %vm21, %v20
    %s23 = scalar_lea.vmem %s0, 4
    %v24 = vld [vmem:[%s23] ss:$8 sm:$0xf]
    %25 = vrot.lane.b32.xlu0 %v24, 64
    %v26 = vpop.permute.xlu0 %25
    %vm27 = vcmask 654848
    %28 = vst.msk [vmem:[#allocation0] ss:$8 sm:$0xf] %vm27, %v26
    %s29 = scalar_lea.vmem %s0, 3
    %v30 = vld [vmem:[%s29] ss:$8 sm:$0xf]
    %31 = vrot.lane.b32.xlu0 %v30, 48
    %v32 = vpop.permute.xlu0 %31
    %vm33 = vcmask 523648
    %34 = vst.msk [vmem:[#allocation0] ss:$8 sm:$0xf] %vm33, %v32
    %s35 = scalar_lea.vmem %s0, 2
    %v36 = vld [vmem:[%s35] ss:$8 sm:$0xf]
    %37 = vrot.lane.b32.xlu0 %v36, 32
    %v38 = vpop.permute.xlu0 %37
    %vm39 = vcmask 392448
    %40 = vst.msk [vmem:[#allocation0] ss:$8 sm:$0xf] %vm39, %v38
    %s41 = scalar_lea.vmem %s0, 1
    %v42 = vld [vmem:[%s41] ss:$8 sm:$0xf]
    %43 = vrot.lane.b32.xlu0 %v42, 16
    %v44 = vpop.permute.xlu0 %43
    %vm45 = vcmask 261248
    %46 = vst.msk [vmem:[#allocation0] ss:$8 sm:$0xf] %vm45, %v44
    %s48 = ssub.s32 2, 1
    %v49 = vld [vmem:[#allocation0] sm:%s48]
    %s51 = ssub.s32 2, 1
    %52 = vst [vmem:[%s1] sm:%s51] %v49
    %s53 = scalar_lea.vmem [#allocation0], 8
    %v54 = vld [vmem:[%s53] sm:%s48]
    %s56 = ssub.s32 2, 1
    %s57 = scalar_lea.vmem %s1, 1
    %58 = vst [vmem:[%s57] sm:%s56] %v54
    %s59 = scalar_lea.vmem [#allocation0], 16
    %v60 = vld [vmem:[%s59] sm:%s48]
    %s62 = ssub.s32 2, 1
    %s63 = scalar_lea.vmem %s1, 2
    %64 = vst [vmem:[%s63] sm:%s62] %v60
    %s65 = scalar_lea.vmem [#allocation0], 24
    %v66 = vld [vmem:[%s65] sm:%s48]
    %s68 = ssub.s32 2, 1
    %s69 = scalar_lea.vmem %s1, 3
    %70 = vst [vmem:[%s69] sm:%s68] %v66

// kernel: ire_forward.2
$region0: #{ire_forward.2}
  #allocation0 [shape = 'u32[]', space=smem, size = 0x4, offset = 0x4, fixed_abs, tag = 'smem constant byte address 0x4 - core index']
  #allocation1 [shape = 'u32[72,128]{1,0:T(1,128)}', space=vmem, size = 0x9000, scoped, tag = 'internal scratch']
  %s0 = inlined_call_operand.vmem [shape: f32[2,4,256], index: 0, kind: input, shape index: {}]
  %s1 = inlined_call_operand.vmem [shape: f32[4,2], index: 1, kind: input, shape index: {}]
  %s2 = inlined_call_operand.vmem [shape: f32[1,2], index: 2, kind: input, shape index: {}]
  %s3 = inlined_call_operand.vmem [shape: f32[4,2], index: 3, kind: input, shape index: {}]
  %s4 = inlined_call_operand.vmem [shape: f32[4,1], index: 4, kind: input, shape index: {}]
  %s5 = inlined_call_operand.vmem [shape: f32[2,4,256], index: 5, kind: output, shape index: {0}]
  %s6 = inlined_call_operand.vmem [shape: f32[2,2,256], index: 6, kind: output, shape index: {1}]
  %7 = xla_tuple %s5, %s6
  %s8 = sld [smem:[#allocation0]]
  $region61: #{ire_forward.2} parent=0
    _
  %s10 = ssub.s32 1, %s8
  %s11 = scalar_select 0, %s10, %s8
  loop: start=0, step=1, limit=4
  $region2: #{ire_forward.2} parent=0 // loop_pre_header
    _
  $region3: #{ire_forward.2} parent=0 // loop_header
    %s13 = sphi 0, %s17
    %p14 = scmp.ge.s32.totalorder %s13, 4
    %s23 = sphi 0, %s25
    %s26 = sphi 0, %s23
    %s27 = sphi 0, %s26
    %s43 = sphi 0, %s27
    %s47 = sphi 0, %s47
    %s49 = sphi 0, %s47
    %s50 = sphi 0, %s49
    %s64 = sphi 0, %s50
    %s68 = sphi 0, %s68
    %s70 = sphi 0, %s68
    %s71 = sphi 0, %s70
    %s85 = sphi 0, %s71
    %s89 = sphi 0, %s89
    %s91 = sphi 0, %s89
    %s92 = sphi 0, %s91
    %s106 = sphi 0, %s92
    %s110 = sphi 0, %s110
    %s112 = sphi 0, %s110
    %s113 = sphi 0, %s112
    %s127 = sphi 0, %s113
    %s133 = sphi 0, %s135
    %s136 = sphi 0, %s133
    %s137 = sphi 0, %s136
    %s153 = sphi 0, %s137
    %s159 = sphi 0, %s161
    %s162 = sphi 0, %s159
    %s163 = sphi 0, %s162
    %s179 = sphi 0, %s163
  $region4: #{ire_forward.2} parent=0 // loop_header_branch
    %16 = sbr.rel (%p14) target = $region8
  $region5: #{ire_forward.2} parent=0 // loop_body
    %s18 = ssub.s32 %s13, 1
    %s19 = ssub.s32 %s13, 2
    %s20 = sadd.s32 %s13, 1
    %s21 = ssub.s32 %s13, %s20
    %p22 = scmp.eq.s32.totalorder %s21, 0
    %s24 = sadd.s32 %s23, 1
    %s25 = scalar_select %p22, %s23, %s24
    %p28 = pneg %p22
    %p29 = scmp.eq.s32.totalorder %s13, 1
    %p30 = por %p28, %p29
    %p31 = scmp.ne.s32.totalorder %s23, %s26
    %p32 = scmp.eq.s32.totalorder %s13, 0
    %p33 = por %p31, %p32
    %p34 = scmp.ne.s32.totalorder %s23, %s26
    %p35 = scmp.eq.s32.totalorder %s18, 1
    %p36 = por %p34, %p35
    %p37 = scmp.ne.s32.totalorder %s26, %s27
    %p38 = scmp.eq.s32.totalorder %s18, 0
    %p39 = por %p37, %p38
    %p40 = scmp.ne.s32.totalorder %s26, %s27
    %p41 = scmp.eq.s32.totalorder %s19, 1
    %p42 = por %p40, %p41
    %p44 = scmp.ne.s32.totalorder %s27, %s43
    %p45 = scmp.eq.s32.totalorder %s19, 0
    %p46 = por %p44, %p45
    %s48 = sadd.s32 %s47, 1
    %p51 = scmp.eq.s32.totalorder %s13, 1
    %p52 = scmp.ne.s32.totalorder %s47, %s49
    %p53 = scmp.eq.s32.totalorder %s13, 0
    %p54 = por %p52, %p53
    %p55 = scmp.ne.s32.totalorder %s47, %s49
    %p56 = scmp.eq.s32.totalorder %s18, 1
    %p57 = por %p55, %p56
    %p58 = scmp.ne.s32.totalorder %s49, %s50
    %p59 = scmp.eq.s32.totalorder %s18, 0
    %p60 = por %p58, %p59
    %p61 = scmp.ne.s32.totalorder %s49, %s50
    %p62 = scmp.eq.s32.totalorder %s19, 1
    %p63 = por %p61, %p62
    %p65 = scmp.ne.s32.totalorder %s50, %s64
    %p66 = scmp.eq.s32.totalorder %s19, 0
    %p67 = por %p65, %p66
    %s69 = sadd.s32 %s68, 1
    %p72 = scmp.eq.s32.totalorder %s13, 1
    %p73 = scmp.ne.s32.totalorder %s68, %s70
    %p74 = scmp.eq.s32.totalorder %s13, 0
    %p75 = por %p73, %p74
    %p76 = scmp.ne.s32.totalorder %s68, %s70
    %p77 = scmp.eq.s32.totalorder %s18, 1
    %p78 = por %p76, %p77
    %p79 = scmp.ne.s32.totalorder %s70, %s71
    %p80 = scmp.eq.s32.totalorder %s18, 0
    %p81 = por %p79, %p80
    %p82 = scmp.ne.s32.totalorder %s70, %s71
    %p83 = scmp.eq.s32.totalorder %s19, 1
    %p84 = por %p82, %p83
    %p86 = scmp.ne.s32.totalorder %s71, %s85
    %p87 = scmp.eq.s32.totalorder %s19, 0
    %p88 = por %p86, %p87
    %s90 = sadd.s32 %s89, 1
    %p93 = scmp.eq.s32.totalorder %s13, 1
    %p94 = scmp.ne.s32.totalorder %s89, %s91
    %p95 = scmp.eq.s32.totalorder %s13, 0
    %p96 = por %p94, %p95
    %p97 = scmp.ne.s32.totalorder %s89, %s91
    %p98 = scmp.eq.s32.totalorder %s18, 1
    %p99 = por %p97, %p98
    %p100 = scmp.ne.s32.totalorder %s91, %s92
    %p101 = scmp.eq.s32.totalorder %s18, 0
    %p102 = por %p100, %p101
    %p103 = scmp.ne.s32.totalorder %s91, %s92
    %p104 = scmp.eq.s32.totalorder %s19, 1
    %p105 = por %p103, %p104
    %p107 = scmp.ne.s32.totalorder %s92, %s106
    %p108 = scmp.eq.s32.totalorder %s19, 0
    %p109 = por %p107, %p108
    %s111 = sadd.s32 %s110, 1
    %p114 = scmp.eq.s32.totalorder %s13, 1
    %p115 = scmp.ne.s32.totalorder %s110, %s112
    %p116 = scmp.eq.s32.totalorder %s13, 0
    %p117 = por %p115, %p116
    %p118 = scmp.ne.s32.totalorder %s110, %s112
    %p119 = scmp.eq.s32.totalorder %s18, 1
    %p120 = por %p118, %p119
    %p121 = scmp.ne.s32.totalorder %s112, %s113
    %p122 = scmp.eq.s32.totalorder %s18, 0
    %p123 = por %p121, %p122
    %p124 = scmp.ne.s32.totalorder %s112, %s113
    %p125 = scmp.eq.s32.totalorder %s19, 1
    %p126 = por %p124, %p125
    %p128 = scmp.ne.s32.totalorder %s113, %s127
    %p129 = scmp.eq.s32.totalorder %s19, 0
    %p130 = por %p128, %p129
    %s131 = ssub.s32 %s13, %s20
    %p132 = scmp.eq.s32.totalorder %s131, 0
    %s134 = sadd.s32 %s133, 1
    %s135 = scalar_select %p132, %s133, %s134
    %p138 = pneg %p132
    %p139 = scmp.eq.s32.totalorder %s13, 1
    %p140 = por %p138, %p139
    %p141 = scmp.ne.s32.totalorder %s133, %s136
    %p142 = scmp.eq.s32.totalorder %s13, 0
    %p143 = por %p141, %p142
    %p144 = scmp.ne.s32.totalorder %s133, %s136
    %p145 = scmp.eq.s32.totalorder %s18, 1
    %p146 = por %p144, %p145
    %p147 = scmp.ne.s32.totalorder %s136, %s137
    %p148 = scmp.eq.s32.totalorder %s18, 0
    %p149 = por %p147, %p148
    %p150 = scmp.ne.s32.totalorder %s136, %s137
    %p151 = scmp.eq.s32.totalorder %s19, 1
    %p152 = por %p150, %p151
    %p154 = scmp.ne.s32.totalorder %s137, %s153
    %p155 = scmp.eq.s32.totalorder %s19, 0
    %p156 = por %p154, %p155
    %s157 = ssub.s32 %s13, %s20
    %p158 = scmp.eq.s32.totalorder %s157, 0
    %s160 = sadd.s32 %s159, 1
    %s161 = scalar_select %p158, %s159, %s160
    %p164 = pneg %p158
    %p165 = scmp.eq.s32.totalorder %s13, 1
    %p166 = por %p164, %p165
    %p167 = scmp.ne.s32.totalorder %s159, %s162
    %p168 = scmp.eq.s32.totalorder %s13, 0
    %p169 = por %p167, %p168
    %p170 = scmp.ne.s32.totalorder %s159, %s162
    %p171 = scmp.eq.s32.totalorder %s18, 1
    %p172 = por %p170, %p171
    %p173 = scmp.ne.s32.totalorder %s162, %s163
    %p174 = scmp.eq.s32.totalorder %s18, 0
    %p175 = por %p173, %p174
    %p176 = scmp.ne.s32.totalorder %s162, %s163
    %p177 = scmp.eq.s32.totalorder %s19, 1
    %p178 = por %p176, %p177
    %p180 = scmp.ne.s32.totalorder %s163, %s179
    %p181 = scmp.eq.s32.totalorder %s19, 0
    %p182 = por %p180, %p181
    %p183 = scmp.le.s32.totalorder 1, %s13
    %p184 = scmp.lt.s32.totalorder %s13, 3
    %p185 = pnand %p183, %p184
    %p186 = pneg %p185
    // Predicated region
    $region9: #{ire_forward.2} parent=5 // pred_check
      _
    $region10: #{ire_forward.2} parent=5 // pred_check_branch
      %188 = sbr.rel (%p185) target = $region12
    $region11: #{ire_forward.2} parent=5 // pred_region
      %s189 = ssub.s32 %s13, 1
      // Predicated region
      $region13: #{ire_forward.2} parent=11 // pred_check
        %p190 = pneg %p60
      $region14: #{ire_forward.2} parent=11 // pred_check_branch
        %192 = sbr.rel (%p190) target = $region16
      $region15: #{ire_forward.2} parent=11 // pred_region
        _
      $region16: #{ire_forward.2} parent=11 // pred_fallthru
        _
      // Predicated region
      $region17: #{ire_forward.2} parent=11 // pred_check
        %p193 = pneg %p81
      $region18: #{ire_forward.2} parent=11 // pred_check_branch
        %195 = sbr.rel (%p193) target = $region20
      $region19: #{ire_forward.2} parent=11 // pred_region
        _
      $region20: #{ire_forward.2} parent=11 // pred_fallthru
        _
      // Predicated region
      $region21: #{ire_forward.2} parent=11 // pred_check
        %p196 = pneg %p102
      $region22: #{ire_forward.2} parent=11 // pred_check_branch
        %198 = sbr.rel (%p196) target = $region24
      $region23: #{ire_forward.2} parent=11 // pred_region
        _
      $region24: #{ire_forward.2} parent=11 // pred_fallthru
        _
      // Predicated region
      $region25: #{ire_forward.2} parent=11 // pred_check
        %p199 = pneg %p123
      $region26: #{ire_forward.2} parent=11 // pred_check_branch
        %201 = sbr.rel (%p199) target = $region28
      $region27: #{ire_forward.2} parent=11 // pred_region
        _
      $region28: #{ire_forward.2} parent=11 // pred_fallthru
        _
    $region12: #{ire_forward.2} parent=5 // pred_fallthru
      _
    %p202 = scmp.lt.s32.totalorder %s13, 2
    // Predicated region
    $region29: #{ire_forward.2} parent=5 // pred_check
      %p203 = pneg %p202
    $region30: #{ire_forward.2} parent=5 // pred_check_branch
      %205 = sbr.rel (%p203) target = $region32
    $region31: #{ire_forward.2} parent=5 // pred_region
      // Predicated region
      $region33: #{ire_forward.2} parent=31 // pred_check
        %p206 = pneg %p33
      $region34: #{ire_forward.2} parent=31 // pred_check_branch
        %208 = sbr.rel (%p206) target = $region36
      $region35: #{ire_forward.2} parent=31 // pred_region
        %p209 = scmp.lt.s32.totalorder %s13, 1
        %s210 = scalar_select %p209, %s13, 1
        %s211 = smul.addr %s210, 2
        %s212 = smul.addr %s211, 4
        %s213 = scalar_lea.vmem %s0, %s212
      $region36: #{ire_forward.2} parent=31 // pred_fallthru
        _
    $region32: #{ire_forward.2} parent=5 // pred_fallthru
      _
    %p214 = scmp.le.s32.totalorder 1, %s13
    %p215 = scmp.lt.s32.totalorder %s13, 3
    %p216 = pnand %p214, %p215
    %p217 = pneg %p216
    // Predicated region
    $region37: #{ire_forward.2} parent=5 // pred_check
      _
    $region38: #{ire_forward.2} parent=5 // pred_check_branch
      %219 = sbr.rel (%p216) target = $region40
    $region39: #{ire_forward.2} parent=5 // pred_region
      %s220 = ssub.s32 %s13, 1
      %p221 = scmp.lt.s32.totalorder %s18, 1
      %s222 = scalar_select %p221, %s18, 1
      %s223 = smul.addr %s222, 2
      %s224 = smul.addr %s223, 4
      %s225 = scalar_lea.vmem %s0, %s224
      %p226 = pneg %p39
      %p227 = pneg %p36
      %p228 = pneg %p60
      %p229 = pneg %p57
      %p230 = pneg %p81
      %p231 = pneg %p78
      %p232 = pneg %p102
      %p233 = pneg %p99
      %p234 = pneg %p123
      %p235 = pneg %p120
      %p236 = pneg %p149
      %p237 = pneg %p146
      %p238 = scmp.lt.s32.totalorder %s18, 1
      %s239 = scalar_select %p238, %s18, 1
      %s240 = smul.addr %s239, 2
      %s241 = smul.addr %s240, 4
      %s242 = scalar_lea.vmem %s5, %s241
      %p243 = pneg %p175
      %p244 = pneg %p172
      %p245 = scmp.lt.s32.totalorder %s18, 1
      %s246 = scalar_select %p245, %s18, 1
      %s247 = smul.addr %s246, 2
      %s248 = smul.addr %s247, 2
      %s249 = scalar_lea.vmem %s6, %s248
      %p250 = scmp.lt.s32.totalorder %s18, 1
      %s251 = scalar_select %p250, %s18, 1
      %s252 = smul.addr %s251, 2
      %s253 = smul.addr %s252, 4
      %s254 = scalar_lea.vmem %s0, %s253
      %p255 = scmp.lt.s32.totalorder %s18, 1
      %s256 = scalar_select %p255, %s18, 1
      %s257 = smul.addr %s256, 2
      %s258 = smul.addr %s257, 4
      %s259 = scalar_lea.vmem %s5, %s258
      %p260 = scmp.lt.s32.totalorder %s18, 1
      %s261 = scalar_select %p260, %s18, 1
      %s262 = smul.addr %s261, 2
      %s263 = smul.addr %s262, 2
      %s264 = scalar_lea.vmem %s6, %s263
      %v265 = vld [vmem:[%s254] sm:$0xff]
      %267 = vst [vmem:[#allocation1] ss:$2 sm:$0xff] %v265
      %v268 = vld.sshfl [vmem:[#allocation1] sm:$0xff pattern:$0x75316420]
      %v269 = vld.sshfl [vmem:[#allocation1 + $0x8] sm:$0xff pattern:$0x75316420]
      %vm272 = vcmask 1043456
      %v273 = vsel %vm272, %v268, 0.0
      %v274 = vsel %vm272, %v269, 0.0
      %v275 = vadd.f32 %v273, %v274
      %276 = vadd.xlane.f32.xlu0 %v275
      %v277 = vpop.xlane.xlu0 %276
      %v278 = vrcp.pop 256.0
      %v279 = vmul.f32 256.0, %v278
      %v280 = vsub.f32 1.0, %v279
      %v281 = vmul.f32 %v278, %v280
      %v282 = vadd.f32 %v278, %v281
      %vm283 = vweird.f32 %v278
      %v284 = vsel %vm283, %v278, %v282
      %v285 = vmul.f32 %v277, %v284
      %v286 = vld [vmem:[%s1] sm:$0xf]
      %v287 = vmul.f32 %v286, %v285
      %vm288 = vcmask 11264
      %v289 = vsel %vm288, %v287, 0.0
      %v290 = vrot.slane %v289, 4
      %v291 = vadd.f32 %v289, %v290
      %v292 = vrot.slane %v291, 2
      %v293 = vadd.f32 %v291, %v292
      %v294 = vrot.slane %v293, 1
      %v295 = vadd.f32 %v293, %v294
      %v296 = vld [vmem:[%s2] sm:$0x1]
      %v297 = vadd.f32 %v295, %v296
      %v298 = vmax.f32 %v297, 0.0
      %v299 = vld [vmem:[%s3] sm:$0xf]
      %v300 = vperm.slane %v298, 0
      %v301 = vmul.f32 %v299, %v300
      %v302 = vsel %vm288, %v301, 0.0
      %303 = vadd.xlane.f32.xlu0 %v302
      %v304 = vpop.xlane.xlu0 %303
      %v305 = vld [vmem:[%s4] sm:$0xf]
      %v306 = vadd.f32 %v304, %v305
      %v307 = vxor.u32 %v306, 2147483648
      %v308 = vmul.f32 %v307, 1.442695
      %v309 = vpow.pop %v308
      %v310 = vadd.f32 %v309, 1.0
      %v311 = vrcp.pop %v310
      %v312 = vmul.f32 %v310, %v311
      %v313 = vsub.f32 1.0, %v312
      %v314 = vmul.f32 %v311, %v313
      %v315 = vadd.f32 %v311, %v314
      %vm316 = vweird.f32 %v310
      %vm317 = vweird.f32 %v311
      %vm318 = vmor %vm316, %vm317
      %v319 = vsel %vm318, %v311, %v315
      %v320 = vand.u32 2147483647, %v310
      %vm321 = vcmp.eq.f32.partialorder %v320, 8.507059e+37
      %v322 = vand.u32 %v310, 2147483648
      %v323 = vor.u32 1.1754944e-38, %v322
      %v324 = vsel %vm321, %v323, %v319
      %v325 = vmul.f32 1.0, %v324
      %327 = vset.pattern.permute.xlu0 0
      %328 = vperm.xlu0 %327, %v325
      %v329 = vpop.permute.xlu0 %328
      %331 = vst [vmem:[#allocation1] ss:$2 sm:$0xff] %v265
      %v332 = vld.sshfl [vmem:[#allocation1] sm:$0xff pattern:$0x75316420]
      %v333 = vld.sshfl [vmem:[#allocation1 + $0x8] sm:$0xff pattern:$0x75316420]
      %v336 = vmul.f32 %v329, %v332
      %v337 = vmul.f32 %v329, %v333
      %v340 = vrot.slane %v337, 4
      %v341 = vsel %vm272, %v336, %v340
      %343 = vst [vmem:[%s259] sm:$0xff] %v341
      %v344 = vsel %vm272, %v336, -inf
      %v345 = vrot.slane %v344, 4
      %v346 = vmax.f32 %v344, %v345
      %v347 = vrot.slane %v346, 2
      %v348 = vmax.f32 %v346, %v347
      %v349 = vrot.slane %v348, 1
      %v350 = vmax.f32 %v348, %v349
      %v351 = vsel %vm272, %v337, -inf
      %v352 = vrot.slane %v351, 4
      %v353 = vmax.f32 %v351, %v352
      %v354 = vrot.slane %v353, 2
      %v355 = vmax.f32 %v353, %v354
      %v356 = vrot.slane %v355, 1
      %v357 = vmax.f32 %v355, %v356
      %v358 = vsel %vm272, %v336, 0.0
      %v359 = vrot.slane %v358, 4
      %v360 = vadd.f32 %v358, %v359
      %v361 = vrot.slane %v360, 2
      %v362 = vadd.f32 %v360, %v361
      %v363 = vrot.slane %v362, 1
      %v364 = vadd.f32 %v362, %v363
      %v365 = vsel %vm272, %v337, 0.0
      %v366 = vrot.slane %v365, 4
      %v367 = vadd.f32 %v365, %v366
      %v368 = vrot.slane %v367, 2
      %v369 = vadd.f32 %v367, %v368
      %v370 = vrot.slane %v369, 1
      %v371 = vadd.f32 %v369, %v370
      %v372 = vrcp.pop 4.0
      %v373 = vmul.f32 4.0, %v372
      %v374 = vsub.f32 1.0, %v373
      %v375 = vmul.f32 %v372, %v374
      %v376 = vadd.f32 %v372, %v375
      %vm377 = vweird.f32 %v372
      %v378 = vsel %vm377, %v372, %v376
      %v379 = vmul.f32 %v364, %v378
      %v380 = vmul.f32 %v371, %v378
      %vm381 = vcmask 1040384
      %v382 = vsel %vm381, %v350, %v379
      %v383 = vsel %vm381, %v357, %v380
      %v386 = vrot.slane %v383, 6
      %vm387 = vcmask 1041408
      %v388 = vsel %vm387, %v382, %v386
      %390 = vst [vmem:[%s264] sm:$0xf] %v388
      %p391 = scmp.lt.s32.totalorder %s18, 1
      %s392 = scalar_select %p391, %s18, 1
      %s393 = smul.addr %s392, 2
      %s394 = smul.addr %s393, 4
      %s395 = scalar_lea.vmem %s5, %s394
      %p396 = scmp.lt.s32.totalorder %s18, 1
      %s397 = scalar_select %p396, %s18, 1
      %s398 = smul.addr %s397, 2
      %s399 = smul.addr %s398, 2
      %s400 = scalar_lea.vmem %s6, %s399
      // Predicated region
      $region41: #{ire_forward.2} parent=39 // pred_check
        %p401 = pneg %p146
      $region42: #{ire_forward.2} parent=39 // pred_check_branch
        %403 = sbr.rel (%p401) target = $region44
      $region43: #{ire_forward.2} parent=39 // pred_region
        _
      $region44: #{ire_forward.2} parent=39 // pred_fallthru
        _
      // Predicated region
      $region45: #{ire_forward.2} parent=39 // pred_check
        %p404 = pneg %p172
      $region46: #{ire_forward.2} parent=39 // pred_check_branch
        %406 = sbr.rel (%p404) target = $region48
      $region47: #{ire_forward.2} parent=39 // pred_region
        _
      $region48: #{ire_forward.2} parent=39 // pred_fallthru
        _
    $region40: #{ire_forward.2} parent=5 // pred_fallthru
      _
    %p407 = scmp.le.s32.totalorder 2, %s13
    // Predicated region
    $region49: #{ire_forward.2} parent=5 // pred_check
      %p408 = pneg %p407
    $region50: #{ire_forward.2} parent=5 // pred_check_branch
      %410 = sbr.rel (%p408) target = $region52
    $region51: #{ire_forward.2} parent=5 // pred_region
      %s411 = ssub.s32 %s13, 2
      // Predicated region
      $region53: #{ire_forward.2} parent=51 // pred_check
        %p412 = pneg %p152
      $region54: #{ire_forward.2} parent=51 // pred_check_branch
        %414 = sbr.rel (%p412) target = $region56
      $region55: #{ire_forward.2} parent=51 // pred_region
        %p415 = scmp.lt.s32.totalorder %s19, 1
        %s416 = scalar_select %p415, %s19, 1
        %s417 = smul.addr %s416, 2
        %s418 = smul.addr %s417, 4
        %s419 = scalar_lea.vmem %s5, %s418
      $region56: #{ire_forward.2} parent=51 // pred_fallthru
        _
      // Predicated region
      $region57: #{ire_forward.2} parent=51 // pred_check
        %p420 = pneg %p178
      $region58: #{ire_forward.2} parent=51 // pred_check_branch
        %422 = sbr.rel (%p420) target = $region60
      $region59: #{ire_forward.2} parent=51 // pred_region
        %p423 = scmp.lt.s32.totalorder %s19, 1
        %s424 = scalar_select %p423, %s19, 1
        %s425 = smul.addr %s424, 2
        %s426 = smul.addr %s425, 2
        %s427 = scalar_lea.vmem %s6, %s426
      $region60: #{ire_forward.2} parent=51 // pred_fallthru
        _
    $region52: #{ire_forward.2} parent=5 // pred_fallthru
      _
  $region6: #{ire_forward.2} parent=0 // loop_footer
    %s17 = sadd.s32 1, %s13
  $region7: #{ire_forward.2} parent=0 // loop_footer_branch
    %12 = sbr.rel target = $region3
  $region8: #{ire_forward.2} parent=0 // loop_exit
    _

// kernel: ire_forward.3
$region0: #{ire_forward.3}
  #allocation0 [shape = 'u32[]', space=smem, size = 0x4, offset = 0x4, fixed_abs, tag = 'smem constant byte address 0x4 - core index']
  #allocation1 [shape = 'u32[72,128]{1,0:T(1,128)}', space=vmem, size = 0x9000, scoped, tag = 'internal scratch']
  %s0 = inlined_call_operand.vmem [shape: f32[2,98,256], index: 0, kind: input, shape index: {}]
  %s1 = inlined_call_operand.vmem [shape: f32[2,4,256], index: 1, kind: input, shape index: {}]
  %s2 = inlined_call_operand.vmem [shape: f32[1,98], index: 2, kind: input, shape index: {}]
  %s3 = inlined_call_operand.vmem [shape: f32[1,2], index: 3, kind: input, shape index: {}]
  %s4 = inlined_call_operand.vmem [shape: f32[2,4], index: 4, kind: input, shape index: {}]
  %s5 = inlined_call_operand.vmem [shape: f32[2,1], index: 5, kind: input, shape index: {}]
  %s6 = inlined_call_operand.vmem [shape: f32[4,2], index: 6, kind: input, shape index: {}]
  %s7 = inlined_call_operand.vmem [shape: f32[4,1], index: 7, kind: input, shape index: {}]
  %s8 = inlined_call_operand.vmem [shape: f32[2,4,256], index: 8, kind: output, shape index: {}]
  %s9 = sld [smem:[#allocation0]]
  $region65: #{ire_forward.3} parent=0
    _
  %s11 = ssub.s32 1, %s9
  %s12 = scalar_select 0, %s11, %s9
  loop: start=0, step=1, limit=4
  $region2: #{ire_forward.3} parent=0 // loop_pre_header
    _
  $region3: #{ire_forward.3} parent=0 // loop_header
    %s14 = sphi 0, %s18
    %p15 = scmp.ge.s32.totalorder %s14, 4
    %s24 = sphi 0, %s26
    %s27 = sphi 0, %s24
    %s28 = sphi 0, %s27
    %s44 = sphi 0, %s28
    %s50 = sphi 0, %s52
    %s53 = sphi 0, %s50
    %s54 = sphi 0, %s53
    %s70 = sphi 0, %s54
    %s74 = sphi 0, %s74
    %s76 = sphi 0, %s74
    %s77 = sphi 0, %s76
    %s91 = sphi 0, %s77
    %s95 = sphi 0, %s95
    %s97 = sphi 0, %s95
    %s98 = sphi 0, %s97
    %s112 = sphi 0, %s98
    %s116 = sphi 0, %s116
    %s118 = sphi 0, %s116
    %s119 = sphi 0, %s118
    %s133 = sphi 0, %s119
    %s137 = sphi 0, %s137
    %s139 = sphi 0, %s137
    %s140 = sphi 0, %s139
    %s154 = sphi 0, %s140
    %s158 = sphi 0, %s158
    %s160 = sphi 0, %s158
    %s161 = sphi 0, %s160
    %s175 = sphi 0, %s161
    %s179 = sphi 0, %s179
    %s181 = sphi 0, %s179
    %s182 = sphi 0, %s181
    %s196 = sphi 0, %s182
    %s202 = sphi 0, %s204
    %s205 = sphi 0, %s202
    %s206 = sphi 0, %s205
    %s222 = sphi 0, %s206
  $region4: #{ire_forward.3} parent=0 // loop_header_branch
    %17 = sbr.rel (%p15) target = $region8
  $region5: #{ire_forward.3} parent=0 // loop_body
    %s19 = ssub.s32 %s14, 1
    %s20 = ssub.s32 %s14, 2
    %s21 = sadd.s32 %s14, 1
    %s22 = ssub.s32 %s14, %s21
    %p23 = scmp.eq.s32.totalorder %s22, 0
    %s25 = sadd.s32 %s24, 1
    %s26 = scalar_select %p23, %s24, %s25
    %p29 = pneg %p23
    %p30 = scmp.eq.s32.totalorder %s14, 1
    %p31 = por %p29, %p30
    %p32 = scmp.ne.s32.totalorder %s24, %s27
    %p33 = scmp.eq.s32.totalorder %s14, 0
    %p34 = por %p32, %p33
    %p35 = scmp.ne.s32.totalorder %s24, %s27
    %p36 = scmp.eq.s32.totalorder %s19, 1
    %p37 = por %p35, %p36
    %p38 = scmp.ne.s32.totalorder %s27, %s28
    %p39 = scmp.eq.s32.totalorder %s19, 0
    %p40 = por %p38, %p39
    %p41 = scmp.ne.s32.totalorder %s27, %s28
    %p42 = scmp.eq.s32.totalorder %s20, 1
    %p43 = por %p41, %p42
    %p45 = scmp.ne.s32.totalorder %s28, %s44
    %p46 = scmp.eq.s32.totalorder %s20, 0
    %p47 = por %p45, %p46
    %s48 = ssub.s32 %s14, %s21
    %p49 = scmp.eq.s32.totalorder %s48, 0
    %s51 = sadd.s32 %s50, 1
    %s52 = scalar_select %p49, %s50, %s51
    %p55 = pneg %p49
    %p56 = scmp.eq.s32.totalorder %s14, 1
    %p57 = por %p55, %p56
    %p58 = scmp.ne.s32.totalorder %s50, %s53
    %p59 = scmp.eq.s32.totalorder %s14, 0
    %p60 = por %p58, %p59
    %p61 = scmp.ne.s32.totalorder %s50, %s53
    %p62 = scmp.eq.s32.totalorder %s19, 1
    %p63 = por %p61, %p62
    %p64 = scmp.ne.s32.totalorder %s53, %s54
    %p65 = scmp.eq.s32.totalorder %s19, 0
    %p66 = por %p64, %p65
    %p67 = scmp.ne.s32.totalorder %s53, %s54
    %p68 = scmp.eq.s32.totalorder %s20, 1
    %p69 = por %p67, %p68
    %p71 = scmp.ne.s32.totalorder %s54, %s70
    %p72 = scmp.eq.s32.totalorder %s20, 0
    %p73 = por %p71, %p72
    %s75 = sadd.s32 %s74, 1
    %p78 = scmp.eq.s32.totalorder %s14, 1
    %p79 = scmp.ne.s32.totalorder %s74, %s76
    %p80 = scmp.eq.s32.totalorder %s14, 0
    %p81 = por %p79, %p80
    %p82 = scmp.ne.s32.totalorder %s74, %s76
    %p83 = scmp.eq.s32.totalorder %s19, 1
    %p84 = por %p82, %p83
    %p85 = scmp.ne.s32.totalorder %s76, %s77
    %p86 = scmp.eq.s32.totalorder %s19, 0
    %p87 = por %p85, %p86
    %p88 = scmp.ne.s32.totalorder %s76, %s77
    %p89 = scmp.eq.s32.totalorder %s20, 1
    %p90 = por %p88, %p89
    %p92 = scmp.ne.s32.totalorder %s77, %s91
    %p93 = scmp.eq.s32.totalorder %s20, 0
    %p94 = por %p92, %p93
    %s96 = sadd.s32 %s95, 1
    %p99 = scmp.eq.s32.totalorder %s14, 1
    %p100 = scmp.ne.s32.totalorder %s95, %s97
    %p101 = scmp.eq.s32.totalorder %s14, 0
    %p102 = por %p100, %p101
    %p103 = scmp.ne.s32.totalorder %s95, %s97
    %p104 = scmp.eq.s32.totalorder %s19, 1
    %p105 = por %p103, %p104
    %p106 = scmp.ne.s32.totalorder %s97, %s98
    %p107 = scmp.eq.s32.totalorder %s19, 0
    %p108 = por %p106, %p107
    %p109 = scmp.ne.s32.totalorder %s97, %s98
    %p110 = scmp.eq.s32.totalorder %s20, 1
    %p111 = por %p109, %p110
    %p113 = scmp.ne.s32.totalorder %s98, %s112
    %p114 = scmp.eq.s32.totalorder %s20, 0
    %p115 = por %p113, %p114
    %s117 = sadd.s32 %s116, 1
    %p120 = scmp.eq.s32.totalorder %s14, 1
    %p121 = scmp.ne.s32.totalorder %s116, %s118
    %p122 = scmp.eq.s32.totalorder %s14, 0
    %p123 = por %p121, %p122
    %p124 = scmp.ne.s32.totalorder %s116, %s118
    %p125 = scmp.eq.s32.totalorder %s19, 1
    %p126 = por %p124, %p125
    %p127 = scmp.ne.s32.totalorder %s118, %s119
    %p128 = scmp.eq.s32.totalorder %s19, 0
    %p129 = por %p127, %p128
    %p130 = scmp.ne.s32.totalorder %s118, %s119
    %p131 = scmp.eq.s32.totalorder %s20, 1
    %p132 = por %p130, %p131
    %p134 = scmp.ne.s32.totalorder %s119, %s133
    %p135 = scmp.eq.s32.totalorder %s20, 0
    %p136 = por %p134, %p135
    %s138 = sadd.s32 %s137, 1
    %p141 = scmp.eq.s32.totalorder %s14, 1
    %p142 = scmp.ne.s32.totalorder %s137, %s139
    %p143 = scmp.eq.s32.totalorder %s14, 0
    %p144 = por %p142, %p143
    %p145 = scmp.ne.s32.totalorder %s137, %s139
    %p146 = scmp.eq.s32.totalorder %s19, 1
    %p147 = por %p145, %p146
    %p148 = scmp.ne.s32.totalorder %s139, %s140
    %p149 = scmp.eq.s32.totalorder %s19, 0
    %p150 = por %p148, %p149
    %p151 = scmp.ne.s32.totalorder %s139, %s140
    %p152 = scmp.eq.s32.totalorder %s20, 1
    %p153 = por %p151, %p152
    %p155 = scmp.ne.s32.totalorder %s140, %s154
    %p156 = scmp.eq.s32.totalorder %s20, 0
    %p157 = por %p155, %p156
    %s159 = sadd.s32 %s158, 1
    %p162 = scmp.eq.s32.totalorder %s14, 1
    %p163 = scmp.ne.s32.totalorder %s158, %s160
    %p164 = scmp.eq.s32.totalorder %s14, 0
    %p165 = por %p163, %p164
    %p166 = scmp.ne.s32.totalorder %s158, %s160
    %p167 = scmp.eq.s32.totalorder %s19, 1
    %p168 = por %p166, %p167
    %p169 = scmp.ne.s32.totalorder %s160, %s161
    %p170 = scmp.eq.s32.totalorder %s19, 0
    %p171 = por %p169, %p170
    %p172 = scmp.ne.s32.totalorder %s160, %s161
    %p173 = scmp.eq.s32.totalorder %s20, 1
    %p174 = por %p172, %p173
    %p176 = scmp.ne.s32.totalorder %s161, %s175
    %p177 = scmp.eq.s32.totalorder %s20, 0
    %p178 = por %p176, %p177
    %s180 = sadd.s32 %s179, 1
    %p183 = scmp.eq.s32.totalorder %s14, 1
    %p184 = scmp.ne.s32.totalorder %s179, %s181
    %p185 = scmp.eq.s32.totalorder %s14, 0
    %p186 = por %p184, %p185
    %p187 = scmp.ne.s32.totalorder %s179, %s181
    %p188 = scmp.eq.s32.totalorder %s19, 1
    %p189 = por %p187, %p188
    %p190 = scmp.ne.s32.totalorder %s181, %s182
    %p191 = scmp.eq.s32.totalorder %s19, 0
    %p192 = por %p190, %p191
    %p193 = scmp.ne.s32.totalorder %s181, %s182
    %p194 = scmp.eq.s32.totalorder %s20, 1
    %p195 = por %p193, %p194
    %p197 = scmp.ne.s32.totalorder %s182, %s196
    %p198 = scmp.eq.s32.totalorder %s20, 0
    %p199 = por %p197, %p198
    %s200 = ssub.s32 %s14, %s21
    %p201 = scmp.eq.s32.totalorder %s200, 0
    %s203 = sadd.s32 %s202, 1
    %s204 = scalar_select %p201, %s202, %s203
    %p207 = pneg %p201
    %p208 = scmp.eq.s32.totalorder %s14, 1
    %p209 = por %p207, %p208
    %p210 = scmp.ne.s32.totalorder %s202, %s205
    %p211 = scmp.eq.s32.totalorder %s14, 0
    %p212 = por %p210, %p211
    %p213 = scmp.ne.s32.totalorder %s202, %s205
    %p214 = scmp.eq.s32.totalorder %s19, 1
    %p215 = por %p213, %p214
    %p216 = scmp.ne.s32.totalorder %s205, %s206
    %p217 = scmp.eq.s32.totalorder %s19, 0
    %p218 = por %p216, %p217
    %p219 = scmp.ne.s32.totalorder %s205, %s206
    %p220 = scmp.eq.s32.totalorder %s20, 1
    %p221 = por %p219, %p220
    %p223 = scmp.ne.s32.totalorder %s206, %s222
    %p224 = scmp.eq.s32.totalorder %s20, 0
    %p225 = por %p223, %p224
    %p226 = scmp.le.s32.totalorder 1, %s14
    %p227 = scmp.lt.s32.totalorder %s14, 3
    %p228 = pnand %p226, %p227
    %p229 = pneg %p228
    // Predicated region
    $region9: #{ire_forward.3} parent=5 // pred_check
      _
    $region10: #{ire_forward.3} parent=5 // pred_check_branch
      %231 = sbr.rel (%p228) target = $region12
    $region11: #{ire_forward.3} parent=5 // pred_region
      %s232 = ssub.s32 %s14, 1
      // Predicated region
      $region13: #{ire_forward.3} parent=11 // pred_check
        %p233 = pneg %p87
      $region14: #{ire_forward.3} parent=11 // pred_check_branch
        %235 = sbr.rel (%p233) target = $region16
      $region15: #{ire_forward.3} parent=11 // pred_region
        _
      $region16: #{ire_forward.3} parent=11 // pred_fallthru
        _
      // Predicated region
      $region17: #{ire_forward.3} parent=11 // pred_check
        %p236 = pneg %p108
      $region18: #{ire_forward.3} parent=11 // pred_check_branch
        %238 = sbr.rel (%p236) target = $region20
      $region19: #{ire_forward.3} parent=11 // pred_region
        _
      $region20: #{ire_forward.3} parent=11 // pred_fallthru
        _
      // Predicated region
      $region21: #{ire_forward.3} parent=11 // pred_check
        %p239 = pneg %p129
      $region22: #{ire_forward.3} parent=11 // pred_check_branch
        %241 = sbr.rel (%p239) target = $region24
      $region23: #{ire_forward.3} parent=11 // pred_region
        _
      $region24: #{ire_forward.3} parent=11 // pred_fallthru
        _
      // Predicated region
      $region25: #{ire_forward.3} parent=11 // pred_check
        %p242 = pneg %p150
      $region26: #{ire_forward.3} parent=11 // pred_check_branch
        %244 = sbr.rel (%p242) target = $region28
      $region27: #{ire_forward.3} parent=11 // pred_region
        _
      $region28: #{ire_forward.3} parent=11 // pred_fallthru
        _
      // Predicated region
      $region29: #{ire_forward.3} parent=11 // pred_check
        %p245 = pneg %p171
      $region30: #{ire_forward.3} parent=11 // pred_check_branch
        %247 = sbr.rel (%p245) target = $region32
      $region31: #{ire_forward.3} parent=11 // pred_region
        _
      $region32: #{ire_forward.3} parent=11 // pred_fallthru
        _
      // Predicated region
      $region33: #{ire_forward.3} parent=11 // pred_check
        %p248 = pneg %p192
      $region34: #{ire_forward.3} parent=11 // pred_check_branch
        %250 = sbr.rel (%p248) target = $region36
      $region35: #{ire_forward.3} parent=11 // pred_region
        _
      $region36: #{ire_forward.3} parent=11 // pred_fallthru
        _
    $region12: #{ire_forward.3} parent=5 // pred_fallthru
      _
    %p251 = scmp.lt.s32.totalorder %s14, 2
    // Predicated region
    $region37: #{ire_forward.3} parent=5 // pred_check
      %p252 = pneg %p251
    $region38: #{ire_forward.3} parent=5 // pred_check_branch
      %254 = sbr.rel (%p252) target = $region40
    $region39: #{ire_forward.3} parent=5 // pred_region
      // Predicated region
      $region41: #{ire_forward.3} parent=39 // pred_check
        %p255 = pneg %p34
      $region42: #{ire_forward.3} parent=39 // pred_check_branch
        %257 = sbr.rel (%p255) target = $region44
      $region43: #{ire_forward.3} parent=39 // pred_region
        %p258 = scmp.lt.s32.totalorder %s14, 1
        %s259 = scalar_select %p258, %s14, 1
        %s260 = smul.addr %s259, 26
        %s261 = smul.addr %s260, 8
        %s262 = scalar_lea.vmem %s0, %s261
      $region44: #{ire_forward.3} parent=39 // pred_fallthru
        _
      // Predicated region
      $region45: #{ire_forward.3} parent=39 // pred_check
        %p263 = pneg %p60
      $region46: #{ire_forward.3} parent=39 // pred_check_branch
        %265 = sbr.rel (%p263) target = $region48
      $region47: #{ire_forward.3} parent=39 // pred_region
        %p266 = scmp.lt.s32.totalorder %s14, 1
        %s267 = scalar_select %p266, %s14, 1
        %s268 = smul.addr %s267, 2
        %s269 = smul.addr %s268, 4
        %s270 = scalar_lea.vmem %s1, %s269
      $region48: #{ire_forward.3} parent=39 // pred_fallthru
        _
    $region40: #{ire_forward.3} parent=5 // pred_fallthru
      _
    %p271 = scmp.le.s32.totalorder 1, %s14
    %p272 = scmp.lt.s32.totalorder %s14, 3
    %p273 = pnand %p271, %p272
    %p274 = pneg %p273
    // Predicated region
    $region49: #{ire_forward.3} parent=5 // pred_check
      _
    $region50: #{ire_forward.3} parent=5 // pred_check_branch
      %276 = sbr.rel (%p273) target = $region52
    $region51: #{ire_forward.3} parent=5 // pred_region
      %s277 = ssub.s32 %s14, 1
      %p278 = scmp.lt.s32.totalorder %s19, 1
      %s279 = scalar_select %p278, %s19, 1
      %s280 = smul.addr %s279, 26
      %s281 = smul.addr %s280, 8
      %s282 = scalar_lea.vmem %s0, %s281
      %p283 = pneg %p40
      %p284 = pneg %p37
      %p285 = scmp.lt.s32.totalorder %s19, 1
      %s286 = scalar_select %p285, %s19, 1
      %s287 = smul.addr %s286, 2
      %s288 = smul.addr %s287, 4
      %s289 = scalar_lea.vmem %s1, %s288
      %p290 = pneg %p66
      %p291 = pneg %p63
      %p292 = pneg %p87
      %p293 = pneg %p84
      %p294 = pneg %p108
      %p295 = pneg %p105
      %p296 = pneg %p129
      %p297 = pneg %p126
      %p298 = pneg %p150
      %p299 = pneg %p147
      %p300 = pneg %p171
      %p301 = pneg %p168
      %p302 = pneg %p192
      %p303 = pneg %p189
      %p304 = pneg %p218
      %p305 = pneg %p215
      %p306 = scmp.lt.s32.totalorder %s19, 1
      %s307 = scalar_select %p306, %s19, 1
      %s308 = smul.addr %s307, 2
      %s309 = smul.addr %s308, 4
      %s310 = scalar_lea.vmem %s8, %s309
      %p311 = scmp.lt.s32.totalorder %s19, 1
      %s312 = scalar_select %p311, %s19, 1
      %s313 = smul.addr %s312, 26
      %s314 = smul.addr %s313, 8
      %s315 = scalar_lea.vmem %s0, %s314
      %p316 = scmp.lt.s32.totalorder %s19, 1
      %s317 = scalar_select %p316, %s19, 1
      %s318 = smul.addr %s317, 2
      %s319 = smul.addr %s318, 4
      %s320 = scalar_lea.vmem %s1, %s319
      %p321 = scmp.lt.s32.totalorder %s19, 1
      %s322 = scalar_select %p321, %s19, 1
      %s323 = smul.addr %s322, 2
      %s324 = smul.addr %s323, 4
      %s325 = scalar_lea.vmem %s8, %s324
      %v326 = vld [vmem:[%s315] sm:$0xff]
      %v327 = vld [vmem:[%s315 + $0x8] sm:$0xff]
      %v328 = vld [vmem:[%s315 + $0x10] sm:$0xff]
      %v329 = vld [vmem:[%s315 + $0x18] sm:$0xff]
      %v330 = vld [vmem:[%s315 + $0x20] sm:$0xff]
      %v331 = vld [vmem:[%s315 + $0x28] sm:$0xff]
      %v332 = vld [vmem:[%s315 + $0x30] sm:$0xff]
      %v333 = vld [vmem:[%s315 + $0x38] sm:$0xff]
      %v334 = vld [vmem:[%s315 + $0x40] sm:$0xff]
      %v335 = vld [vmem:[%s315 + $0x48] sm:$0xff]
      %v336 = vld [vmem:[%s315 + $0x50] sm:$0xff]
      %v337 = vld [vmem:[%s315 + $0x58] sm:$0xff]
      %v338 = vld [vmem:[%s315 + $0x60] sm:$0xff]
      %v339 = vld [vmem:[%s315 + $0x68] sm:$0xff]
      %v340 = vld [vmem:[%s315 + $0x70] sm:$0xff]
      %v341 = vld [vmem:[%s315 + $0x78] sm:$0xff]
      %v342 = vld [vmem:[%s315 + $0x80] sm:$0xff]
      %v343 = vld [vmem:[%s315 + $0x88] sm:$0xff]
      %v344 = vld [vmem:[%s315 + $0x90] sm:$0xff]
      %v345 = vld [vmem:[%s315 + $0x98] sm:$0xff]
      %v346 = vld [vmem:[%s315 + $0xa0] sm:$0xff]
      %v347 = vld [vmem:[%s315 + $0xa8] sm:$0xff]
      %v348 = vld [vmem:[%s315 + $0xb0] sm:$0xff]
      %v349 = vld [vmem:[%s315 + $0xb8] sm:$0xff]
      %v350 = vld [vmem:[%s315 + $0xc0] sm:$0x3]
      %v351 = vld [vmem:[%s315 + $0xc8] sm:$0x3]
      %v352 = vld [vmem:[%s320] sm:$0xff]
      %v353 = vld [vmem:[%s2] sm:$0x1]
      %vm354 = vcmask 801792
      %v356 = vsel %vm354, %v353, 0
      %vm358 = vcmask 1041408
      %v360 = vsel %vm358, %v350, 0
      %v363 = vsel %vm358, %v351, 0
      %365 = vmatpush.msra.mxu0 0.0
      %366 = vmatpush.msra.mxu0 0.0
      %367 = vmatpush.msra.mxu0 0.0
      %368 = vmatpush.msra.mxu0 %v360
      %369 = vmatpush.msra.mxu0 %v348
      %370 = vmatpush.msra.mxu0 %v346
      %371 = vmatpush.msra.mxu0 %v344
      %372 = vmatpush.msra.mxu0 %v342
      %373 = vmatpush.msra.mxu0 %v340
      %374 = vmatpush.msra.mxu0 %v338
      %375 = vmatpush.msra.mxu0 %v336
      %376 = vmatpush.msra.mxu0 %v334
      %377 = vmatpush.msra.mxu0 %v332
      %378 = vmatpush.msra.mxu0 %v330
      %379 = vmatpush.msra.mxu0 %v328
      %380 = vmatpush.msra.mxu0 %v326
      %381 = vmatmul.f32.gmra.mxu0 %v356
      %v382 = vpop.f32.mrf.mxu0
      %v383 = vadd.f32 0.0, %v382
      %384 = vdwg.mxu0
      %385 = vmatpush.msra.mxu0 0.0
      %386 = vmatpush.msra.mxu0 0.0
      %387 = vmatpush.msra.mxu0 0.0
      %388 = vmatpush.msra.mxu0 %v363
      %389 = vmatpush.msra.mxu0 %v349
      %390 = vmatpush.msra.mxu0 %v347
      %391 = vmatpush.msra.mxu0 %v345
      %392 = vmatpush.msra.mxu0 %v343
      %393 = vmatpush.msra.mxu0 %v341
      %394 = vmatpush.msra.mxu0 %v339
      %395 = vmatpush.msra.mxu0 %v337
      %396 = vmatpush.msra.mxu0 %v335
      %397 = vmatpush.msra.mxu0 %v333
      %398 = vmatpush.msra.mxu0 %v331
      %399 = vmatpush.msra.mxu0 %v329
      %400 = vmatpush.msra.mxu0 %v327
      %401 = vmatmul.f32.gmra.mxu0 %v356
      %v402 = vpop.f32.mrf.mxu0
      %v403 = vadd.f32 0.0, %v402
      %404 = vdwg.mxu0
      %v405 = vld [vmem:[%s3] sm:$0x1]
      %407 = vset.pattern.permute.xlu0 0
      %408 = vperm.xlu0 %407, %v405
      %v409 = vpop.permute.xlu0 %408
      %v411 = vperm.slane %v409, 0
      %v412 = vmul.f32 %v383, %v411
      %v413 = vmul.f32 %v403, %v411
      %414 = vset.pattern.permute.xlu0 1
      %415 = vperm.xlu0 %414, %v405
      %v416 = vpop.permute.xlu0 %415
      %v418 = vperm.slane %v416, 0
      %v419 = vadd.f32 %v412, %v418
      %v420 = vadd.f32 %v413, %v418
      %v421 = vxor.u32 %v419, 2147483648
      %v422 = vxor.u32 %v420, 2147483648
      %v423 = vmul.f32 %v421, 1.442695
      %v424 = vpow.pop %v423
      %v425 = vmul.f32 %v422, 1.442695
      %v426 = vpow.pop %v425
      %v427 = vadd.f32 %v424, 1.0
      %v428 = vadd.f32 %v426, 1.0
      %v429 = vrcp.pop %v427
      %v430 = vmul.f32 %v427, %v429
      %v431 = vsub.f32 1.0, %v430
      %v432 = vmul.f32 %v429, %v431
      %v433 = vadd.f32 %v429, %v432
      %vm434 = vweird.f32 %v427
      %vm435 = vweird.f32 %v429
      %vm436 = vmor %vm434, %vm435
      %v437 = vsel %vm436, %v429, %v433
      %v438 = vand.u32 2147483647, %v427
      %vm439 = vcmp.eq.f32.partialorder %v438, 8.507059e+37
      %v440 = vand.u32 %v427, 2147483648
      %v441 = vor.u32 1.1754944e-38, %v440
      %v442 = vsel %vm439, %v441, %v437
      %v443 = vmul.f32 1.0, %v442
      %v444 = vrcp.pop %v428
      %v445 = vmul.f32 %v428, %v444
      %v446 = vsub.f32 1.0, %v445
      %v447 = vmul.f32 %v444, %v446
      %v448 = vadd.f32 %v444, %v447
      %vm449 = vweird.f32 %v428
      %vm450 = vweird.f32 %v444
      %vm451 = vmor %vm449, %vm450
      %v452 = vsel %vm451, %v444, %v448
      %v453 = vand.u32 2147483647, %v428
      %vm454 = vcmp.eq.f32.partialorder %v453, 8.507059e+37
      %v455 = vand.u32 %v428, 2147483648
      %v456 = vor.u32 1.1754944e-38, %v455
      %v457 = vsel %vm454, %v456, %v452
      %v458 = vmul.f32 1.0, %v457
      %v459 = vperm.slane %v443, 0
      %v460 = vperm.slane %v458, 0
      %462 = vst [vmem:[#allocation1] ss:$2 sm:$0xff] %v352
      %v463 = vld.sshfl [vmem:[#allocation1] sm:$0xff pattern:$0x75316420]
      %v464 = vld.sshfl [vmem:[#allocation1 + $0x8] sm:$0xff pattern:$0x75316420]
      %v467 = vmul.f32 %v459, %v463
      %v468 = vmul.f32 %v460, %v464
      %v469 = vld [vmem:[%s4] sm:$0x3]
      %471 = vset.pattern.permute.xlu0 0
      %472 = vperm.xlu0 %471, %v469
      %v473 = vpop.permute.xlu0 %472
      %v475 = vperm.slane %v467, 0
      %v476 = vperm.slane %v468, 0
      %v477 = vmul.f32 %v473, %v475
      %v478 = vmul.f32 %v473, %v476
      %v479 = vadd.f32 %v477, 0.0
      %v480 = vadd.f32 %v478, 0.0
      %481 = vset.pattern.permute.xlu0 1
      %482 = vperm.xlu0 %481, %v469
      %v483 = vpop.permute.xlu0 %482
      %v485 = vperm.slane %v467, 1
      %v486 = vperm.slane %v468, 1
      %v487 = vmul.f32 %v483, %v485
      %v488 = vmul.f32 %v483, %v486
      %v489 = vadd.f32 %v479, %v487
      %v490 = vadd.f32 %v480, %v488
      %491 = vset.pattern.permute.xlu0 2
      %492 = vperm.xlu0 %491, %v469
      %v493 = vpop.permute.xlu0 %492
      %v495 = vperm.slane %v467, 2
      %v496 = vperm.slane %v468, 2
      %v497 = vmul.f32 %v493, %v495
      %v498 = vmul.f32 %v493, %v496
      %v499 = vadd.f32 %v489, %v497
      %v500 = vadd.f32 %v490, %v498
      %501 = vset.pattern.permute.xlu0 3
      %502 = vperm.xlu0 %501, %v469
      %v503 = vpop.permute.xlu0 %502
      %v505 = vperm.slane %v467, 3
      %v506 = vperm.slane %v468, 3
      %v507 = vmul.f32 %v503, %v505
      %v508 = vmul.f32 %v503, %v506
      %v509 = vadd.f32 %v499, %v507
      %v510 = vadd.f32 %v500, %v508
      %v511 = vld [vmem:[%s5] sm:$0x3]
      %513 = vset.pattern.permute.xlu0 0
      %514 = vperm.xlu0 %513, %v511
      %v515 = vpop.permute.xlu0 %514
      %v517 = vadd.f32 %v509, %v515
      %v518 = vadd.f32 %v510, %v515
      %v519 = vmax.f32 %v517, 0.0
      %v520 = vmax.f32 %v518, 0.0
      %v521 = vld [vmem:[%s6] sm:$0xf]
      %523 = vset.pattern.permute.xlu0 0
      %524 = vperm.xlu0 %523, %v521
      %v525 = vpop.permute.xlu0 %524
      %v527 = vperm.slane %v519, 0
      %v528 = vperm.slane %v520, 0
      %v529 = vmul.f32 %v525, %v527
      %v530 = vmul.f32 %v525, %v528
      %v531 = vadd.f32 %v529, 0.0
      %v532 = vadd.f32 %v530, 0.0
      %533 = vset.pattern.permute.xlu0 1
      %534 = vperm.xlu0 %533, %v521
      %v535 = vpop.permute.xlu0 %534
      %v537 = vperm.slane %v519, 1
      %v538 = vperm.slane %v520, 1
      %v539 = vmul.f32 %v535, %v537
      %v540 = vmul.f32 %v535, %v538
      %v541 = vadd.f32 %v531, %v539
      %v542 = vadd.f32 %v532, %v540
      %v543 = vld [vmem:[%s7] sm:$0xf]
      %545 = vset.pattern.permute.xlu0 0
      %546 = vperm.xlu0 %545, %v543
      %v547 = vpop.permute.xlu0 %546
      %v549 = vadd.f32 %v541, %v547
      %v550 = vadd.f32 %v542, %v547
      %v551 = vxor.u32 %v549, 2147483648
      %v552 = vxor.u32 %v550, 2147483648
      %v553 = vmul.f32 %v551, 1.442695
      %v554 = vpow.pop %v553
      %v555 = vmul.f32 %v552, 1.442695
      %v556 = vpow.pop %v555
      %v557 = vadd.f32 %v554, 1.0
      %v558 = vadd.f32 %v556, 1.0
      %v559 = vrcp.pop %v557
      %v560 = vmul.f32 %v557, %v559
      %v561 = vsub.f32 1.0, %v560
      %v562 = vmul.f32 %v559, %v561
      %v563 = vadd.f32 %v559, %v562
      %vm564 = vweird.f32 %v557
      %vm565 = vweird.f32 %v559
      %vm566 = vmor %vm564, %vm565
      %v567 = vsel %vm566, %v559, %v563
      %v568 = vand.u32 2147483647, %v557
      %vm569 = vcmp.eq.f32.partialorder %v568, 8.507059e+37
      %v570 = vand.u32 %v557, 2147483648
      %v571 = vor.u32 1.1754944e-38, %v570
      %v572 = vsel %vm569, %v571, %v567
      %v573 = vmul.f32 1.0, %v572
      %v574 = vrcp.pop %v558
      %v575 = vmul.f32 %v558, %v574
      %v576 = vsub.f32 1.0, %v575
      %v577 = vmul.f32 %v574, %v576
      %v578 = vadd.f32 %v574, %v577
      %vm579 = vweird.f32 %v558
      %vm580 = vweird.f32 %v574
      %vm581 = vmor %vm579, %vm580
      %v582 = vsel %vm581, %v574, %v578
      %v583 = vand.u32 2147483647, %v558
      %vm584 = vcmp.eq.f32.partialorder %v583, 8.507059e+37
      %v585 = vand.u32 %v558, 2147483648
      %v586 = vor.u32 1.1754944e-38, %v585
      %v587 = vsel %vm584, %v586, %v582
      %v588 = vmul.f32 1.0, %v587
      %v589 = vmul.f32 %v573, %v467
      %v590 = vmul.f32 %v588, %v468
      %v593 = vrot.slane %v590, 4
      %vm594 = vcmask 1043456
      %v595 = vsel %vm594, %v589, %v593
      %597 = vst [vmem:[%s325] sm:$0xff] %v595
      %p598 = scmp.lt.s32.totalorder %s19, 1
      %s599 = scalar_select %p598, %s19, 1
      %s600 = smul.addr %s599, 2
      %s601 = smul.addr %s600, 4
      %s602 = scalar_lea.vmem %s8, %s601
      // Predicated region
      $region53: #{ire_forward.3} parent=51 // pred_check
        %p603 = pneg %p215
      $region54: #{ire_forward.3} parent=51 // pred_check_branch
        %605 = sbr.rel (%p603) target = $region56
      $region55: #{ire_forward.3} parent=51 // pred_region
        _
      $region56: #{ire_forward.3} parent=51 // pred_fallthru
        _
    $region52: #{ire_forward.3} parent=5 // pred_fallthru
      _
    %p606 = scmp.le.s32.totalorder 2, %s14
    // Predicated region
    $region57: #{ire_forward.3} parent=5 // pred_check
      %p607 = pneg %p606
    $region58: #{ire_forward.3} parent=5 // pred_check_branch
      %609 = sbr.rel (%p607) target = $region60
    $region59: #{ire_forward.3} parent=5 // pred_region
      %s610 = ssub.s32 %s14, 2
      // Predicated region
      $region61: #{ire_forward.3} parent=59 // pred_check
        %p611 = pneg %p221
      $region62: #{ire_forward.3} parent=59 // pred_check_branch
        %613 = sbr.rel (%p611) target = $region64
      $region63: #{ire_forward.3} parent=59 // pred_region
        %p614 = scmp.lt.s32.totalorder %s20, 1
        %s615 = scalar_select %p614, %s20, 1
        %s616 = smul.addr %s615, 2
        %s617 = smul.addr %s616, 4
        %s618 = scalar_lea.vmem %s8, %s617
      $region64: #{ire_forward.3} parent=59 // pred_fallthru
        _
    $region60: #{ire_forward.3} parent=5 // pred_fallthru
      _
  $region6: #{ire_forward.3} parent=0 // loop_footer
    %s18 = sadd.s32 1, %s14
  $region7: #{ire_forward.3} parent=0 // loop_footer_branch
    %13 = sbr.rel target = $region3
  $region8: #{ire_forward.3} parent=0 // loop_exit
    _

</llo_original>
